<compile_context>
chip_gen: v6e
topology: v6e:2x2x1
jax: 0.10.0
libtpu: 0.0.40
codegen_flags: <defaults>
</compile_context>

<pallas_src>
import jax
import jax.numpy as jnp
from jax.experimental import pallas as pl
from jax.experimental.pallas import tpu as pltpu

# ----------------------------- model config ---------------------------------
VOCAB_SIZE = 50
EMBED_SIZE = 32
NUM_CLASSES = 8
MAX_LEN = 16                      # L
CHANNEL_SIZES = [16, 16, 16]
KERNEL_SIZES = [2, 3, 4]
BATCH = 2

# ----------------------------- kernel config ---------------------------------
LANE = 128                        # TPU lane width
KMAX = max(KERNEL_SIZES)          # 4 conv taps (zero taps for k=2,3 branches)
VOCAB_PAD = 64                    # per-tap block stride in the folded matrix
SENTINEL_ID = VOCAB_SIZE          # id used for out-of-range taps
NEG_MASK = -1e30                  # masks invalid pool positions via the matmul
C_TOTAL = sum(CHANNEL_SIZES)
B_TILE_MAX = 256                  # v7x-safe (64 MiB VMEM); v5e/v6e could use 512

# The two-half one-hot construction below assumes exactly 4 taps of 64 lanes.
assert KMAX == 4 and 2 * VOCAB_PAD == LANE and KMAX * VOCAB_PAD == 2 * LANE
assert SENTINEL_ID < VOCAB_PAD


# ------------------------------- kernel -------------------------------------
def textcnn_kernel(tok_ref,     # (b_tile, L)               int32
                   m_ref,       # (KMAX*VOCAB_PAD, C_TOTAL) bf16  folded emb+conv
                   bconv_ref,   # (1, C_TOTAL)              f32
                   wfc_ref,     # (C_TOTAL, LANE)           bf16  (class-padded)
                   bfc_ref,     # (1, LANE)                 f32   (class-padded)
                   out_ref):    # (b_tile, LANE)            f32
    bt, l = tok_ref.shape
    btl = bt * l
    tok = tok_ref[...]                                        # (bt, L)

    # Per-tap shifted token ids, built in the (sample, time) lane domain on
    # tiny int arrays.  Out-of-range taps get SENTINEL_ID, whose folded matrix
    # row is 0 except -1e30 on the last tap of each conv branch (pool masking
    # is therefore done by the matmul itself, no iota/where needed).
    cols = []
    for j in range(KMAX):
        if j == 0:
            tj = tok
        else:
            tj = jnp.concatenate(
                [tok[:, j:], jnp.full((bt, j), SENTINEL_ID, jnp.int32)], axis=1)
        if j % 2:
            tj = tj + VOCAB_PAD           # lane offset within its 128-lane half
        cols.append(tj.reshape(bt, l, 1))

    # Shifted one-hot over (tap, vocab): two 128-lane halves, 2 taps each
    # (blocks are disjoint, so | is exact).
    lane = jax.lax.broadcasted_iota(jnp.int32, (1, 1, LANE), 2)
    x_lo = ((lane == cols[0]) | (lane == cols[1])).astype(jnp.bfloat16)
    x_hi = ((lane == cols[2]) | (lane == cols[3])).astype(jnp.bfloat16)
    x = jnp.concatenate([x_lo, x_hi], axis=2).reshape(btl, 2 * LANE)

    # Single fused (embedding o conv) matmul, K = 256.
    y = jnp.dot(x, m_ref[...], preferred_element_type=jnp.float32)   # (btl, 48)

    # Global max pool over time; invalid positions are ~-1e30 and never win.
    pooled = jnp.max(y.reshape(bt, l, C_TOTAL), axis=1)              # (bt, 48)

    # bias + ReLU commute past the max -> applied once per sample.
    feat = jnp.maximum(pooled + bconv_ref[...], 0.0)

    # TODO(synk): dropout is identity (inference / eval semantics).
    # fc: output classes padded to 128 lanes -> lane-dense, unmasked stores.
    out_ref[...] = jnp.dot(feat.astype(jnp.bfloat16), wfc_ref[...],
                           preferred_element_type=jnp.float32) + bfc_ref[...]


# ------------------------------ host side -----------------------------------
def _round_up(x, m):
    return ((x + m - 1) // m) * m


def pack_folded_params(params):
    """Fold embedding table into the conv weights.

    Rows [j*64, j*64+V) of tap-block j hold (embedding @ W_j) for each branch,
    row j*64 + SENTINEL_ID is -1e30 for the LAST tap of each branch (masks
    out-of-range pool positions inside the matmul), everything else is zero.
    """
    tbl = params["embedding"]                                     # (V, E) f32
    m = jnp.zeros((KMAX * VOCAB_PAD, C_TOTAL), jnp.float32)
    col = 0
    for w, k, c in zip(params["w_conv"], KERNEL_SIZES, CHANNEL_SIZES):
        for j in range(k):
            m = m.at[j * VOCAB_PAD:j * VOCAB_PAD + VOCAB_SIZE,
                     col:col + c].set(tbl @ w[j])
        m = m.at[(k - 1) * VOCAB_PAD + SENTINEL_ID, col:col + c].set(NEG_MASK)
        col += c
    bconv = jnp.concatenate([b.reshape(1, -1) for b in params["b_conv"]],
                            axis=1).astype(jnp.float32)
    return m.astype(jnp.bfloat16), bconv


@jax.jit
def textcnn_forward(x_tokens, params):
    """x_tokens: (N, L) int token ids -> (N, NUM_CLASSES) f32 logits."""
    n, l = x_tokens.shape
    assert l == MAX_LEN

    # Tile: multiple of 16; >= 2 grid steps once n >= 32 (v7x megacore); capped
    # for v7x's 64 MiB VMEM.
    b_tile = min(B_TILE_MAX, max(16, _round_up(-(-n // 2), 16)))
    n_pad = _round_up(n, b_tile)

    tok = x_tokens.astype(jnp.int32)
    if n_pad != n:
        tok = jnp.concatenate([tok, jnp.zeros((n_pad - n, l), jnp.int32)], axis=0)

    m_fold, bconv = pack_folded_params(params)
    wfc = jnp.zeros((C_TOTAL, LANE), jnp.float32)
    wfc = wfc.at[:, :NUM_CLASSES].set(params["w_fc"]).astype(jnp.bfloat16)
    bfc = jnp.zeros((1, LANE), jnp.float32).at[:, :NUM_CLASSES].set(params["b_fc"])

    full = lambda a: pl.BlockSpec(a.shape, lambda b: (0,) * a.ndim)

    flops = 2 * n_pad * (MAX_LEN * (KMAX * VOCAB_PAD) * C_TOTAL + C_TOTAL * LANE)
    bytes_accessed = (tok.size * 4 + m_fold.size * 2 + bconv.size * 4
                      + wfc.size * 2 + bfc.size * 4 + n_pad * LANE * 4)

    out = pl.pallas_call(
        textcnn_kernel,
        out_shape=jax.ShapeDtypeStruct((n_pad, LANE), jnp.float32),
        grid_spec=pltpu.PrefetchScalarGridSpec(
            num_scalar_prefetch=0,
            grid=(n_pad // b_tile,),
            in_specs=[
                pl.BlockSpec((b_tile, MAX_LEN), lambda b: (b, 0)),  # tokens
                full(m_fold),                                       # folded emb+conv
                full(bconv),                                        # conv bias
                full(wfc),                                          # fc weight (padded)
                full(bfc),                                          # fc bias (padded)
            ],
            out_specs=pl.BlockSpec((b_tile, LANE), lambda b: (b, 0)),
        ),
        compiler_params=pltpu.CompilerParams(
            dimension_semantics=("parallel",),
            vmem_limit_bytes=32 * 1024 * 1024),
        cost_estimate=pl.CostEstimate(
            flops=flops, transcendentals=0, bytes_accessed=bytes_accessed),
    )(tok, m_fold, bconv, wfc, bfc)

    return out[:n, :NUM_CLASSES]


def textcnn_reference(x_tokens, params):
    """Pure-JAX f32 reference matching the PyTorch module (eval mode)."""
    emb = params["embedding"][x_tokens]                       # (N, L, E)
    feats = []
    for w, b, k in zip(params["w_conv"], params["b_conv"], KERNEL_SIZES):
        lout = MAX_LEN - k + 1
        acc = jnp.zeros((x_tokens.shape[0], lout, w.shape[2]), jnp.float32)
        for j in range(k):
            acc = acc + jnp.einsum("nle,ec->nlc", emb[:, j:j + lout, :], w[j])
        acc = jnp.maximum(acc + b, 0.0)                        # bias + ReLU
        feats.append(jnp.max(acc, axis=1))                     # global max pool
    feat = jnp.concatenate(feats, axis=1)
    return feat @ params["w_fc"] + params["b_fc"]


def init_params(key):
    keys = jax.random.split(key, 9)
    params = {}
    params["embedding"] = jax.random.normal(
        keys[0], (VOCAB_SIZE, EMBED_SIZE), jnp.float32)
    w_conv, b_conv = [], []
    for i, (k, c) in enumerate(zip(KERNEL_SIZES, CHANNEL_SIZES)):
        # PyTorch Conv1d weight is (C_out, E, k); stored here as (k, E, C_out).
        w = 0.1 * jax.random.normal(keys[1 + i], (k, EMBED_SIZE, c), jnp.float32)
        b = 0.1 * jax.random.normal(keys[4 + i], (1, c), jnp.float32)
        w_conv.append(w)
        b_conv.append(b)
    params["w_conv"] = w_conv
    params["b_conv"] = b_conv
    params["w_fc"] = 0.1 * jax.random.normal(
        keys[7], (C_TOTAL, NUM_CLASSES), jnp.float32)
    params["b_fc"] = 0.1 * jax.random.normal(
        keys[8], (1, NUM_CLASSES), jnp.float32)
    return params


if __name__ == "__main__":
    key = jax.random.PRNGKey(0)
    pkey, xkey, xkey2 = jax.random.split(key, 3)
    params = init_params(pkey)

    # Small shape implied by the module: batch=2, seq len=16 token ids.
    x = jax.random.randint(xkey, (BATCH, MAX_LEN), 0, VOCAB_SIZE, dtype=jnp.int32)
    logits = textcnn_forward(x, params)
    jax.block_until_ready(logits)
    assert logits.shape == (BATCH, NUM_CLASSES)
    ref = textcnn_reference(x, params)
    # Only intended precision loss is bf16 (folded) weights on the MXU path.
    assert jnp.allclose(logits, ref, atol=5e-2, rtol=5e-2), \
        float(jnp.max(jnp.abs(logits - ref)))

    # Second, larger batch exercises multi-step grid + batch padding.
    x2 = jax.random.randint(xkey2, (40, MAX_LEN), 0, VOCAB_SIZE, dtype=jnp.int32)
    logits2 = textcnn_forward(x2, params)
    jax.block_until_ready(logits2)
    ref2 = textcnn_reference(x2, params)
    assert jnp.allclose(logits2, ref2, atol=5e-2, rtol=5e-2), \
        float(jnp.max(jnp.abs(logits2 - ref2)))

    print("KERNEL_OK")
</pallas_src>

<mosaic_0001>
module attributes {stable_mosaic.version = 11 : i64} {
  func.func @textcnn_kernel(%arg0: i32, %arg1: memref<16x16xi32, #tpu.memory_space<vmem>>, %arg2: memref<256x48xbf16, #tpu.memory_space<vmem>>, %arg3: memref<1x48xf32, #tpu.memory_space<vmem>>, %arg4: memref<48x128xbf16, #tpu.memory_space<vmem>>, %arg5: memref<1x128xf32, #tpu.memory_space<vmem>>, %arg6: memref<16x128xf32, #tpu.memory_space<vmem>>) attributes {dimension_semantics = [#tpu.dimension_semantics<parallel>], iteration_bounds = array<i64: 1>, scalar_prefetch = 0 : i64, scratch_operands = 0 : i64, tpu.core_type = #tpu.core_type<tc>, window_params = [{transform_indices = @transform_0, window_bounds = array<i64: 16, 16>}, {pipeline_mode = #tpu.pipeline_mode<synchronous>, transform_indices = @transform_1, window_bounds = array<i64: 256, 48>}, {pipeline_mode = #tpu.pipeline_mode<synchronous>, transform_indices = @transform_2, window_bounds = array<i64: 1, 48>}, {pipeline_mode = #tpu.pipeline_mode<synchronous>, transform_indices = @transform_3, window_bounds = array<i64: 48, 128>}, {pipeline_mode = #tpu.pipeline_mode<synchronous>, transform_indices = @transform_4, window_bounds = array<i64: 1, 128>}, {transform_indices = @transform_5, window_bounds = array<i64: 16, 128>}]} {
    %c0 = arith.constant 0 : index
    %c0_0 = arith.constant 0 : index
    %0 = vector.load %arg1[%c0, %c0_0] : memref<16x16xi32, #tpu.memory_space<vmem>>, vector<16x16xi32>
    %1 = vector.shape_cast %0 : vector<16x16xi32> to vector<16x16x1xi32>
    %2 = vector.extract_strided_slice %0 {offsets = [0, 1], sizes = [16, 15], strides = [1, 1]} : vector<16x16xi32> to vector<16x15xi32>
    %c50_i32 = arith.constant 50 : i32
    %3 = vector.broadcast %c50_i32 : i32 to vector<16x1xi32>
    %4 = tpu.concatenate %2, %3 in 1 : vector<16x15xi32>, vector<16x1xi32> -> vector<16x16xi32>
    %c64_i32 = arith.constant 64 : i32
    %5 = vector.broadcast %c64_i32 : i32 to vector<16x16xi32>
    %6 = arith.addi %4, %5 : vector<16x16xi32>
    %7 = vector.shape_cast %6 : vector<16x16xi32> to vector<16x16x1xi32>
    %8 = vector.extract_strided_slice %0 {offsets = [0, 2], sizes = [16, 14], strides = [1, 1]} : vector<16x16xi32> to vector<16x14xi32>
    %c50_i32_1 = arith.constant 50 : i32
    %9 = vector.broadcast %c50_i32_1 : i32 to vector<16x2xi32>
    %10 = tpu.concatenate %8, %9 in 1 : vector<16x14xi32>, vector<16x2xi32> -> vector<16x16xi32>
    %11 = vector.shape_cast %10 : vector<16x16xi32> to vector<16x16x1xi32>
    %12 = vector.extract_strided_slice %0 {offsets = [0, 3], sizes = [16, 13], strides = [1, 1]} : vector<16x16xi32> to vector<16x13xi32>
    %c50_i32_2 = arith.constant 50 : i32
    %13 = vector.broadcast %c50_i32_2 : i32 to vector<16x3xi32>
    %14 = tpu.concatenate %12, %13 in 1 : vector<16x13xi32>, vector<16x3xi32> -> vector<16x16xi32>
    %c64_i32_3 = arith.constant 64 : i32
    %15 = vector.broadcast %c64_i32_3 : i32 to vector<16x16xi32>
    %16 = arith.addi %14, %15 : vector<16x16xi32>
    %17 = vector.shape_cast %16 : vector<16x16xi32> to vector<16x16x1xi32>
    %18 = tpu.iota {dimensions = array<i32: 2>} : vector<1x1x128xi32>
    %19 = vector.broadcast %18 : vector<1x1x128xi32> to vector<16x16x128xi32>
    %20 = vector.broadcast %1 : vector<16x16x1xi32> to vector<16x16x128xi32>
    %21 = arith.cmpi eq, %19, %20 : vector<16x16x128xi32>
    %22 = vector.broadcast %18 : vector<1x1x128xi32> to vector<16x16x128xi32>
    %23 = vector.broadcast %7 : vector<16x16x1xi32> to vector<16x16x128xi32>
    %24 = arith.cmpi eq, %22, %23 : vector<16x16x128xi32>
    %25 = arith.ori %21, %24 : vector<16x16x128xi1>
    %26 = arith.extui %25 : vector<16x16x128xi1> to vector<16x16x128xi32>
    %27 = arith.sitofp %26 : vector<16x16x128xi32> to vector<16x16x128xf32>
    %28 = arith.truncf %27 : vector<16x16x128xf32> to vector<16x16x128xbf16>
    %29 = vector.broadcast %18 : vector<1x1x128xi32> to vector<16x16x128xi32>
    %30 = vector.broadcast %11 : vector<16x16x1xi32> to vector<16x16x128xi32>
    %31 = arith.cmpi eq, %29, %30 : vector<16x16x128xi32>
    %32 = vector.broadcast %18 : vector<1x1x128xi32> to vector<16x16x128xi32>
    %33 = vector.broadcast %17 : vector<16x16x1xi32> to vector<16x16x128xi32>
    %34 = arith.cmpi eq, %32, %33 : vector<16x16x128xi32>
    %35 = arith.ori %31, %34 : vector<16x16x128xi1>
    %36 = arith.extui %35 : vector<16x16x128xi1> to vector<16x16x128xi32>
    %37 = arith.sitofp %36 : vector<16x16x128xi32> to vector<16x16x128xf32>
    %38 = arith.truncf %37 : vector<16x16x128xf32> to vector<16x16x128xbf16>
    %39 = tpu.concatenate %28, %38 in 2 : vector<16x16x128xbf16>, vector<16x16x128xbf16> -> vector<16x16x256xbf16>
    %40 = vector.shape_cast %39 : vector<16x16x256xbf16> to vector<256x256xbf16>
    %c0_4 = arith.constant 0 : index
    %c0_5 = arith.constant 0 : index
    %41 = vector.load %arg2[%c0_4, %c0_5] : memref<256x48xbf16, #tpu.memory_space<vmem>>, vector<256x48xbf16>
    %cst = arith.constant dense<0.000000e+00> : vector<256x48xf32>
    %42 = tpu.matmul %40, %41, %cst {dimension_numbers = #tpu.dot_dimension_numbers<[1], [0], [0], [1], [0, 0, 1, 1], [], []>} : vector<256x256xbf16>, vector<256x48xbf16>, vector<256x48xf32> -> vector<256x48xf32>
    %43 = vector.shape_cast %42 : vector<256x48xf32> to vector<16x16x48xf32>
    %cst_6 = arith.constant dense<0xFF800000> : vector<16x48xf32>
    %44 = vector.multi_reduction <maximumf>, %43, %cst_6 [1] : vector<16x16x48xf32> to vector<16x48xf32>
    %c0_7 = arith.constant 0 : index
    %c0_8 = arith.constant 0 : index
    %45 = vector.load %arg3[%c0_7, %c0_8] : memref<1x48xf32, #tpu.memory_space<vmem>>, vector<1x48xf32>
    %46 = vector.broadcast %45 : vector<1x48xf32> to vector<16x48xf32>
    %47 = arith.addf %44, %46 : vector<16x48xf32>
    %cst_9 = arith.constant 0.000000e+00 : f32
    %48 = vector.broadcast %cst_9 : f32 to vector<16x48xf32>
    %49 = arith.maximumf %47, %48 : vector<16x48xf32>
    %50 = arith.truncf %49 : vector<16x48xf32> to vector<16x48xbf16>
    %c0_10 = arith.constant 0 : index
    %c0_11 = arith.constant 0 : index
    %51 = vector.load %arg4[%c0_10, %c0_11] : memref<48x128xbf16, #tpu.memory_space<vmem>>, vector<48x128xbf16>
    %cst_12 = arith.constant dense<0.000000e+00> : vector<16x128xf32>
    %52 = tpu.matmul %50, %51, %cst_12 {dimension_numbers = #tpu.dot_dimension_numbers<[1], [0], [0], [1], [0, 0, 1, 1], [], []>} : vector<16x48xbf16>, vector<48x128xbf16>, vector<16x128xf32> -> vector<16x128xf32>
    %c0_13 = arith.constant 0 : index
    %c0_14 = arith.constant 0 : index
    %53 = vector.load %arg5[%c0_13, %c0_14] : memref<1x128xf32, #tpu.memory_space<vmem>>, vector<1x128xf32>
    %54 = vector.broadcast %53 : vector<1x128xf32> to vector<16x128xf32>
    %55 = arith.addf %52, %54 : vector<16x128xf32>
    %c0_15 = arith.constant 0 : index
    %c0_16 = arith.constant 0 : index
    %56 = vector.load %arg6[%c0_15, %c0_16] : memref<16x128xf32, #tpu.memory_space<vmem>>, vector<16x128xf32>
    tpu.vector_store %arg6[%c0_15, %c0_16], %55 {strides = array<i32>} : memref<16x128xf32, #tpu.memory_space<vmem>>, vector<16x128xf32>,
    return
  }
  func.func @transform_0(%arg0: i32) -> (i32, i32) {
    %c0_i32 = arith.constant 0 : i32
    %c0_i32_0 = arith.constant 0 : i32
    return %arg0, %c0_i32 : i32, i32
  }
  func.func @transform_1(%arg0: i32) -> (i32, i32) {
    %c0_i32 = arith.constant 0 : i32
    %c0_i32_0 = arith.constant 0 : i32
    %c0_i32_1 = arith.constant 0 : i32
    return %c0_i32, %c0_i32_0 : i32, i32
  }
  func.func @transform_2(%arg0: i32) -> (i32, i32) {
    %c0_i32 = arith.constant 0 : i32
    %c0_i32_0 = arith.constant 0 : i32
    %c0_i32_1 = arith.constant 0 : i32
    return %c0_i32, %c0_i32_0 : i32, i32
  }
  func.func @transform_3(%arg0: i32) -> (i32, i32) {
    %c0_i32 = arith.constant 0 : i32
    %c0_i32_0 = arith.constant 0 : i32
    %c0_i32_1 = arith.constant 0 : i32
    return %c0_i32, %c0_i32_0 : i32, i32
  }
  func.func @transform_4(%arg0: i32) -> (i32, i32) {
    %c0_i32 = arith.constant 0 : i32
    %c0_i32_0 = arith.constant 0 : i32
    %c0_i32_1 = arith.constant 0 : i32
    return %c0_i32, %c0_i32_0 : i32, i32
  }
  func.func @transform_5(%arg0: i32) -> (i32, i32) {
    %c0_i32 = arith.constant 0 : i32
    %c0_i32_0 = arith.constant 0 : i32
    return %arg0, %c0_i32 : i32, i32
  }
}

</mosaic_0001>

<llo_original>
// kernel: textcnn_forward.1
$region0: #{textcnn_forward.1}
  #allocation0 [shape = 'u32[]', space=smem, size = 0x4, offset = 0x4, fixed_abs, tag = 'smem constant byte address 0x4 - core index']
  #allocation1 [shape = 'u32[144,128]{1,0:T(1,128)}', space=vmem, size = 0x12000, scoped, tag = 'internal scratch']
  %s0 = inlined_call_operand.vmem [shape: s32[16,16], index: 0, kind: input, shape index: {}]
  %s1 = inlined_call_operand.vmem [shape: bf16[256,48], index: 1, kind: input, shape index: {}]
  %s2 = inlined_call_operand.vmem [shape: f32[1,48], index: 2, kind: input, shape index: {}]
  %s3 = inlined_call_operand.vmem [shape: bf16[48,128], index: 3, kind: input, shape index: {}]
  %s4 = inlined_call_operand.vmem [shape: f32[1,128], index: 4, kind: input, shape index: {}]
  %s5 = inlined_call_operand.vmem [shape: f32[16,128], index: 5, kind: output, shape index: {}]
  %s6 = sld [smem:[#allocation0]]
  $region30: #{textcnn_forward.1} parent=0
    _
  %s8 = ssub.s32 1, %s6
  %s9 = scalar_select 0, %s8, %s6
  // Predicated region
  $region2: #{textcnn_forward.1} parent=0 // pred_check
    _
  $region3: #{textcnn_forward.1} parent=0 // pred_check_branch
    %11 = sbr.rel (0) target = $region5
  $region4: #{textcnn_forward.1} parent=0 // pred_region
    _
  $region5: #{textcnn_forward.1} parent=0 // pred_fallthru
    _
  // Predicated region
  $region6: #{textcnn_forward.1} parent=0 // pred_check
    _
  $region7: #{textcnn_forward.1} parent=0 // pred_check_branch
    %13 = sbr.rel (0) target = $region9
  $region8: #{textcnn_forward.1} parent=0 // pred_region
    _
  $region9: #{textcnn_forward.1} parent=0 // pred_fallthru
    _
  // Predicated region
  $region10: #{textcnn_forward.1} parent=0 // pred_check
    _
  $region11: #{textcnn_forward.1} parent=0 // pred_check_branch
    %15 = sbr.rel (0) target = $region13
  $region12: #{textcnn_forward.1} parent=0 // pred_region
    _
  $region13: #{textcnn_forward.1} parent=0 // pred_fallthru
    _
  // Predicated region
  $region14: #{textcnn_forward.1} parent=0 // pred_check
    _
  $region15: #{textcnn_forward.1} parent=0 // pred_check_branch
    %17 = sbr.rel (0) target = $region17
  $region16: #{textcnn_forward.1} parent=0 // pred_region
    _
  $region17: #{textcnn_forward.1} parent=0 // pred_fallthru
    _
  // Predicated region
  $region18: #{textcnn_forward.1} parent=0 // pred_check
    _
  $region19: #{textcnn_forward.1} parent=0 // pred_check_branch
    %19 = sbr.rel (0) target = $region21
  $region20: #{textcnn_forward.1} parent=0 // pred_region
    _
  $region21: #{textcnn_forward.1} parent=0 // pred_fallthru
    _
  %v21 = vld [vmem:[%s0] sm:$0xff]
  %v22 = vld [vmem:[%s0 + $0x8] sm:$0xff]
  %v23 = vlaneseq
  %v24 = vshrl.u32 %v23, 7
  %v25 = vsub.s32 0, %v24
  %v26 = vrot.slane %v21, %v25
  %28 = vbcast.lane.b32.xlu0 %v26, 256
  %v29 = vpop.permute.xlu0 %28
  %s31 = sor.u32 256, 8
  %32 = vbcast.lane.b32.xlu0 %v26, %s31
  %v33 = vpop.permute.xlu0 %32
  %v34 = vlaneseq
  %v35 = vshrl.u32 %v34, 7
  %v36 = vsub.s32 1, %v35
  %v37 = vrot.slane %v21, %v36
  %39 = vbcast.lane.b32.xlu0 %v37, 256
  %v40 = vpop.permute.xlu0 %39
  %s42 = sor.u32 256, 8
  %43 = vbcast.lane.b32.xlu0 %v37, %s42
  %v44 = vpop.permute.xlu0 %43
  %v45 = vlaneseq
  %v46 = vshrl.u32 %v45, 7
  %v47 = vsub.s32 2, %v46
  %v48 = vrot.slane %v21, %v47
  %50 = vbcast.lane.b32.xlu0 %v48, 256
  %v51 = vpop.permute.xlu0 %50
  %s53 = sor.u32 256, 8
  %54 = vbcast.lane.b32.xlu0 %v48, %s53
  %v55 = vpop.permute.xlu0 %54
  %v56 = vlaneseq
  %v57 = vshrl.u32 %v56, 7
  %v58 = vsub.s32 3, %v57
  %v59 = vrot.slane %v21, %v58
  %61 = vbcast.lane.b32.xlu0 %v59, 256
  %v62 = vpop.permute.xlu0 %61
  %s64 = sor.u32 256, 8
  %65 = vbcast.lane.b32.xlu0 %v59, %s64
  %v66 = vpop.permute.xlu0 %65
  %v67 = vlaneseq
  %v68 = vshrl.u32 %v67, 7
  %v69 = vsub.s32 4, %v68
  %v70 = vrot.slane %v21, %v69
  %72 = vbcast.lane.b32.xlu0 %v70, 256
  %v73 = vpop.permute.xlu0 %72
  %s75 = sor.u32 256, 8
  %76 = vbcast.lane.b32.xlu0 %v70, %s75
  %v77 = vpop.permute.xlu0 %76
  %v78 = vlaneseq
  %v79 = vshrl.u32 %v78, 7
  %v80 = vsub.s32 5, %v79
  %v81 = vrot.slane %v21, %v80
  %83 = vbcast.lane.b32.xlu0 %v81, 256
  %v84 = vpop.permute.xlu0 %83
  %s86 = sor.u32 256, 8
  %87 = vbcast.lane.b32.xlu0 %v81, %s86
  %v88 = vpop.permute.xlu0 %87
  %v89 = vlaneseq
  %v90 = vshrl.u32 %v89, 7
  %v91 = vsub.s32 6, %v90
  %v92 = vrot.slane %v21, %v91
  %94 = vbcast.lane.b32.xlu0 %v92, 256
  %v95 = vpop.permute.xlu0 %94
  %s97 = sor.u32 256, 8
  %98 = vbcast.lane.b32.xlu0 %v92, %s97
  %v99 = vpop.permute.xlu0 %98
  %v100 = vlaneseq
  %v101 = vshrl.u32 %v100, 7
  %v102 = vsub.s32 7, %v101
  %v103 = vrot.slane %v21, %v102
  %105 = vbcast.lane.b32.xlu0 %v103, 256
  %v106 = vpop.permute.xlu0 %105
  %s108 = sor.u32 256, 8
  %109 = vbcast.lane.b32.xlu0 %v103, %s108
  %v110 = vpop.permute.xlu0 %109
  %v111 = vlaneseq
  %v112 = vshrl.u32 %v111, 7
  %v113 = vsub.s32 0, %v112
  %v114 = vrot.slane %v22, %v113
  %116 = vbcast.lane.b32.xlu0 %v114, 256
  %v117 = vpop.permute.xlu0 %116
  %s119 = sor.u32 256, 8
  %120 = vbcast.lane.b32.xlu0 %v114, %s119
  %v121 = vpop.permute.xlu0 %120
  %v122 = vlaneseq
  %v123 = vshrl.u32 %v122, 7
  %v124 = vsub.s32 1, %v123
  %v125 = vrot.slane %v22, %v124
  %127 = vbcast.lane.b32.xlu0 %v125, 256
  %v128 = vpop.permute.xlu0 %127
  %s130 = sor.u32 256, 8
  %131 = vbcast.lane.b32.xlu0 %v125, %s130
  %v132 = vpop.permute.xlu0 %131
  %v133 = vlaneseq
  %v134 = vshrl.u32 %v133, 7
  %v135 = vsub.s32 2, %v134
  %v136 = vrot.slane %v22, %v135
  %138 = vbcast.lane.b32.xlu0 %v136, 256
  %v139 = vpop.permute.xlu0 %138
  %s141 = sor.u32 256, 8
  %142 = vbcast.lane.b32.xlu0 %v136, %s141
  %v143 = vpop.permute.xlu0 %142
  %v144 = vlaneseq
  %v145 = vshrl.u32 %v144, 7
  %v146 = vsub.s32 3, %v145
  %v147 = vrot.slane %v22, %v146
  %149 = vbcast.lane.b32.xlu0 %v147, 256
  %v150 = vpop.permute.xlu0 %149
  %s152 = sor.u32 256, 8
  %153 = vbcast.lane.b32.xlu0 %v147, %s152
  %v154 = vpop.permute.xlu0 %153
  %v155 = vlaneseq
  %v156 = vshrl.u32 %v155, 7
  %v157 = vsub.s32 4, %v156
  %v158 = vrot.slane %v22, %v157
  %160 = vbcast.lane.b32.xlu0 %v158, 256
  %v161 = vpop.permute.xlu0 %160
  %s163 = sor.u32 256, 8
  %164 = vbcast.lane.b32.xlu0 %v158, %s163
  %v165 = vpop.permute.xlu0 %164
  %v166 = vlaneseq
  %v167 = vshrl.u32 %v166, 7
  %v168 = vsub.s32 5, %v167
  %v169 = vrot.slane %v22, %v168
  %171 = vbcast.lane.b32.xlu0 %v169, 256
  %v172 = vpop.permute.xlu0 %171
  %s174 = sor.u32 256, 8
  %175 = vbcast.lane.b32.xlu0 %v169, %s174
  %v176 = vpop.permute.xlu0 %175
  %v177 = vlaneseq
  %v178 = vshrl.u32 %v177, 7
  %v179 = vsub.s32 6, %v178
  %v180 = vrot.slane %v22, %v179
  %182 = vbcast.lane.b32.xlu0 %v180, 256
  %v183 = vpop.permute.xlu0 %182
  %s185 = sor.u32 256, 8
  %186 = vbcast.lane.b32.xlu0 %v180, %s185
  %v187 = vpop.permute.xlu0 %186
  %v188 = vlaneseq
  %v189 = vshrl.u32 %v188, 7
  %v190 = vsub.s32 7, %v189
  %v191 = vrot.slane %v22, %v190
  %193 = vbcast.lane.b32.xlu0 %v191, 256
  %v194 = vpop.permute.xlu0 %193
  %s196 = sor.u32 256, 8
  %197 = vbcast.lane.b32.xlu0 %v191, %s196
  %v198 = vpop.permute.xlu0 %197
  %199 = vrot.lane.b32.xlu0 %v21, 127
  %v200 = vpop.permute.xlu0 %199
  %201 = vrot.lane.b32.xlu0 %v22, 127
  %v202 = vpop.permute.xlu0 %201
  %vm203 = vcmask 121856
  %v204 = vsel %vm203, %v200, 50
  %v205 = vsel %vm203, %v202, 50
  %v206 = vadd.s32 %v204, 64
  %v207 = vadd.s32 %v205, 64
  %v208 = vlaneseq
  %v209 = vshrl.u32 %v208, 7
  %v210 = vsub.s32 0, %v209
  %v211 = vrot.slane %v206, %v210
  %213 = vbcast.lane.b32.xlu0 %v211, 256
  %v214 = vpop.permute.xlu0 %213
  %s216 = sor.u32 256, 8
  %217 = vbcast.lane.b32.xlu0 %v211, %s216
  %v218 = vpop.permute.xlu0 %217
  %v219 = vlaneseq
  %v220 = vshrl.u32 %v219, 7
  %v221 = vsub.s32 1, %v220
  %v222 = vrot.slane %v206, %v221
  %224 = vbcast.lane.b32.xlu0 %v222, 256
  %v225 = vpop.permute.xlu0 %224
  %s227 = sor.u32 256, 8
  %228 = vbcast.lane.b32.xlu0 %v222, %s227
  %v229 = vpop.permute.xlu0 %228
  %v230 = vlaneseq
  %v231 = vshrl.u32 %v230, 7
  %v232 = vsub.s32 2, %v231
  %v233 = vrot.slane %v206, %v232
  %235 = vbcast.lane.b32.xlu0 %v233, 256
  %v236 = vpop.permute.xlu0 %235
  %s238 = sor.u32 256, 8
  %239 = vbcast.lane.b32.xlu0 %v233, %s238
  %v240 = vpop.permute.xlu0 %239
  %v241 = vlaneseq
  %v242 = vshrl.u32 %v241, 7
  %v243 = vsub.s32 3, %v242
  %v244 = vrot.slane %v206, %v243
  %246 = vbcast.lane.b32.xlu0 %v244, 256
  %v247 = vpop.permute.xlu0 %246
  %s249 = sor.u32 256, 8
  %250 = vbcast.lane.b32.xlu0 %v244, %s249
  %v251 = vpop.permute.xlu0 %250
  %v252 = vlaneseq
  %v253 = vshrl.u32 %v252, 7
  %v254 = vsub.s32 4, %v253
  %v255 = vrot.slane %v206, %v254
  %257 = vbcast.lane.b32.xlu0 %v255, 256
  %v258 = vpop.permute.xlu0 %257
  %s260 = sor.u32 256, 8
  %261 = vbcast.lane.b32.xlu0 %v255, %s260
  %v262 = vpop.permute.xlu0 %261
  %v263 = vlaneseq
  %v264 = vshrl.u32 %v263, 7
  %v265 = vsub.s32 5, %v264
  %v266 = vrot.slane %v206, %v265
  %268 = vbcast.lane.b32.xlu0 %v266, 256
  %v269 = vpop.permute.xlu0 %268
  %s271 = sor.u32 256, 8
  %272 = vbcast.lane.b32.xlu0 %v266, %s271
  %v273 = vpop.permute.xlu0 %272
  %v274 = vlaneseq
  %v275 = vshrl.u32 %v274, 7
  %v276 = vsub.s32 6, %v275
  %v277 = vrot.slane %v206, %v276
  %279 = vbcast.lane.b32.xlu0 %v277, 256
  %v280 = vpop.permute.xlu0 %279
  %s282 = sor.u32 256, 8
  %283 = vbcast.lane.b32.xlu0 %v277, %s282
  %v284 = vpop.permute.xlu0 %283
  %v285 = vlaneseq
  %v286 = vshrl.u32 %v285, 7
  %v287 = vsub.s32 7, %v286
  %v288 = vrot.slane %v206, %v287
  %290 = vbcast.lane.b32.xlu0 %v288, 256
  %v291 = vpop.permute.xlu0 %290
  %s293 = sor.u32 256, 8
  %294 = vbcast.lane.b32.xlu0 %v288, %s293
  %v295 = vpop.permute.xlu0 %294
  %v296 = vlaneseq
  %v297 = vshrl.u32 %v296, 7
  %v298 = vsub.s32 0, %v297
  %v299 = vrot.slane %v207, %v298
  %301 = vbcast.lane.b32.xlu0 %v299, 256
  %v302 = vpop.permute.xlu0 %301
  %s304 = sor.u32 256, 8
  %305 = vbcast.lane.b32.xlu0 %v299, %s304
  %v306 = vpop.permute.xlu0 %305
  %v307 = vlaneseq
  %v308 = vshrl.u32 %v307, 7
  %v309 = vsub.s32 1, %v308
  %v310 = vrot.slane %v207, %v309
  %312 = vbcast.lane.b32.xlu0 %v310, 256
  %v313 = vpop.permute.xlu0 %312
  %s315 = sor.u32 256, 8
  %316 = vbcast.lane.b32.xlu0 %v310, %s315
  %v317 = vpop.permute.xlu0 %316
  %v318 = vlaneseq
  %v319 = vshrl.u32 %v318, 7
  %v320 = vsub.s32 2, %v319
  %v321 = vrot.slane %v207, %v320
  %323 = vbcast.lane.b32.xlu0 %v321, 256
  %v324 = vpop.permute.xlu0 %323
  %s326 = sor.u32 256, 8
  %327 = vbcast.lane.b32.xlu0 %v321, %s326
  %v328 = vpop.permute.xlu0 %327
  %v329 = vlaneseq
  %v330 = vshrl.u32 %v329, 7
  %v331 = vsub.s32 3, %v330
  %v332 = vrot.slane %v207, %v331
  %334 = vbcast.lane.b32.xlu0 %v332, 256
  %v335 = vpop.permute.xlu0 %334
  %s337 = sor.u32 256, 8
  %338 = vbcast.lane.b32.xlu0 %v332, %s337
  %v339 = vpop.permute.xlu0 %338
  %v340 = vlaneseq
  %v341 = vshrl.u32 %v340, 7
  %v342 = vsub.s32 4, %v341
  %v343 = vrot.slane %v207, %v342
  %345 = vbcast.lane.b32.xlu0 %v343, 256
  %v346 = vpop.permute.xlu0 %345
  %s348 = sor.u32 256, 8
  %349 = vbcast.lane.b32.xlu0 %v343, %s348
  %v350 = vpop.permute.xlu0 %349
  %v351 = vlaneseq
  %v352 = vshrl.u32 %v351, 7
  %v353 = vsub.s32 5, %v352
  %v354 = vrot.slane %v207, %v353
  %356 = vbcast.lane.b32.xlu0 %v354, 256
  %v357 = vpop.permute.xlu0 %356
  %s359 = sor.u32 256, 8
  %360 = vbcast.lane.b32.xlu0 %v354, %s359
  %v361 = vpop.permute.xlu0 %360
  %v362 = vlaneseq
  %v363 = vshrl.u32 %v362, 7
  %v364 = vsub.s32 6, %v363
  %v365 = vrot.slane %v207, %v364
  %367 = vbcast.lane.b32.xlu0 %v365, 256
  %v368 = vpop.permute.xlu0 %367
  %s370 = sor.u32 256, 8
  %371 = vbcast.lane.b32.xlu0 %v365, %s370
  %v372 = vpop.permute.xlu0 %371
  %v373 = vlaneseq
  %v374 = vshrl.u32 %v373, 7
  %v375 = vsub.s32 7, %v374
  %v376 = vrot.slane %v207, %v375
  %378 = vbcast.lane.b32.xlu0 %v376, 256
  %v379 = vpop.permute.xlu0 %378
  %s381 = sor.u32 256, 8
  %382 = vbcast.lane.b32.xlu0 %v376, %s381
  %v383 = vpop.permute.xlu0 %382
  %384 = vrot.lane.b32.xlu0 %v21, 126
  %v385 = vpop.permute.xlu0 %384
  %386 = vrot.lane.b32.xlu0 %v22, 126
  %v387 = vpop.permute.xlu0 %386
  %vm388 = vcmask 113664
  %v389 = vsel %vm388, %v385, 50
  %v390 = vsel %vm388, %v387, 50
  %v391 = vlaneseq
  %v392 = vshrl.u32 %v391, 7
  %v393 = vsub.s32 0, %v392
  %v394 = vrot.slane %v389, %v393
  %396 = vbcast.lane.b32.xlu0 %v394, 256
  %v397 = vpop.permute.xlu0 %396
  %s399 = sor.u32 256, 8
  %400 = vbcast.lane.b32.xlu0 %v394, %s399
  %v401 = vpop.permute.xlu0 %400
  %v402 = vlaneseq
  %v403 = vshrl.u32 %v402, 7
  %v404 = vsub.s32 1, %v403
  %v405 = vrot.slane %v389, %v404
  %407 = vbcast.lane.b32.xlu0 %v405, 256
  %v408 = vpop.permute.xlu0 %407
  %s410 = sor.u32 256, 8
  %411 = vbcast.lane.b32.xlu0 %v405, %s410
  %v412 = vpop.permute.xlu0 %411
  %v413 = vlaneseq
  %v414 = vshrl.u32 %v413, 7
  %v415 = vsub.s32 2, %v414
  %v416 = vrot.slane %v389, %v415
  %418 = vbcast.lane.b32.xlu0 %v416, 256
  %v419 = vpop.permute.xlu0 %418
  %s421 = sor.u32 256, 8
  %422 = vbcast.lane.b32.xlu0 %v416, %s421
  %v423 = vpop.permute.xlu0 %422
  %v424 = vlaneseq
  %v425 = vshrl.u32 %v424, 7
  %v426 = vsub.s32 3, %v425
  %v427 = vrot.slane %v389, %v426
  %429 = vbcast.lane.b32.xlu0 %v427, 256
  %v430 = vpop.permute.xlu0 %429
  %s432 = sor.u32 256, 8
  %433 = vbcast.lane.b32.xlu0 %v427, %s432
  %v434 = vpop.permute.xlu0 %433
  %v435 = vlaneseq
  %v436 = vshrl.u32 %v435, 7
  %v437 = vsub.s32 4, %v436
  %v438 = vrot.slane %v389, %v437
  %440 = vbcast.lane.b32.xlu0 %v438, 256
  %v441 = vpop.permute.xlu0 %440
  %s443 = sor.u32 256, 8
  %444 = vbcast.lane.b32.xlu0 %v438, %s443
  %v445 = vpop.permute.xlu0 %444
  %v446 = vlaneseq
  %v447 = vshrl.u32 %v446, 7
  %v448 = vsub.s32 5, %v447
  %v449 = vrot.slane %v389, %v448
  %451 = vbcast.lane.b32.xlu0 %v449, 256
  %v452 = vpop.permute.xlu0 %451
  %s454 = sor.u32 256, 8
  %455 = vbcast.lane.b32.xlu0 %v449, %s454
  %v456 = vpop.permute.xlu0 %455
  %v457 = vlaneseq
  %v458 = vshrl.u32 %v457, 7
  %v459 = vsub.s32 6, %v458
  %v460 = vrot.slane %v389, %v459
  %462 = vbcast.lane.b32.xlu0 %v460, 256
  %v463 = vpop.permute.xlu0 %462
  %s465 = sor.u32 256, 8
  %466 = vbcast.lane.b32.xlu0 %v460, %s465
  %v467 = vpop.permute.xlu0 %466
  %v468 = vlaneseq
  %v469 = vshrl.u32 %v468, 7
  %v470 = vsub.s32 7, %v469
  %v471 = vrot.slane %v389, %v470
  %473 = vbcast.lane.b32.xlu0 %v471, 256
  %v474 = vpop.permute.xlu0 %473
  %s476 = sor.u32 256, 8
  %477 = vbcast.lane.b32.xlu0 %v471, %s476
  %v478 = vpop.permute.xlu0 %477
  %v479 = vlaneseq
  %v480 = vshrl.u32 %v479, 7
  %v481 = vsub.s32 0, %v480
  %v482 = vrot.slane %v390, %v481
  %484 = vbcast.lane.b32.xlu0 %v482, 256
  %v485 = vpop.permute.xlu0 %484
  %s487 = sor.u32 256, 8
  %488 = vbcast.lane.b32.xlu0 %v482, %s487
  %v489 = vpop.permute.xlu0 %488
  %v490 = vlaneseq
  %v491 = vshrl.u32 %v490, 7
  %v492 = vsub.s32 1, %v491
  %v493 = vrot.slane %v390, %v492
  %495 = vbcast.lane.b32.xlu0 %v493, 256
  %v496 = vpop.permute.xlu0 %495
  %s498 = sor.u32 256, 8
  %499 = vbcast.lane.b32.xlu0 %v493, %s498
  %v500 = vpop.permute.xlu0 %499
  %v501 = vlaneseq
  %v502 = vshrl.u32 %v501, 7
  %v503 = vsub.s32 2, %v502
  %v504 = vrot.slane %v390, %v503
  %506 = vbcast.lane.b32.xlu0 %v504, 256
  %v507 = vpop.permute.xlu0 %506
  %s509 = sor.u32 256, 8
  %510 = vbcast.lane.b32.xlu0 %v504, %s509
  %v511 = vpop.permute.xlu0 %510
  %v512 = vlaneseq
  %v513 = vshrl.u32 %v512, 7
  %v514 = vsub.s32 3, %v513
  %v515 = vrot.slane %v390, %v514
  %517 = vbcast.lane.b32.xlu0 %v515, 256
  %v518 = vpop.permute.xlu0 %517
  %s520 = sor.u32 256, 8
  %521 = vbcast.lane.b32.xlu0 %v515, %s520
  %v522 = vpop.permute.xlu0 %521
  %v523 = vlaneseq
  %v524 = vshrl.u32 %v523, 7
  %v525 = vsub.s32 4, %v524
  %v526 = vrot.slane %v390, %v525
  %528 = vbcast.lane.b32.xlu0 %v526, 256
  %v529 = vpop.permute.xlu0 %528
  %s531 = sor.u32 256, 8
  %532 = vbcast.lane.b32.xlu0 %v526, %s531
  %v533 = vpop.permute.xlu0 %532
  %v534 = vlaneseq
  %v535 = vshrl.u32 %v534, 7
  %v536 = vsub.s32 5, %v535
  %v537 = vrot.slane %v390, %v536
  %539 = vbcast.lane.b32.xlu0 %v537, 256
  %v540 = vpop.permute.xlu0 %539
  %s542 = sor.u32 256, 8
  %543 = vbcast.lane.b32.xlu0 %v537, %s542
  %v544 = vpop.permute.xlu0 %543
  %v545 = vlaneseq
  %v546 = vshrl.u32 %v545, 7
  %v547 = vsub.s32 6, %v546
  %v548 = vrot.slane %v390, %v547
  %550 = vbcast.lane.b32.xlu0 %v548, 256
  %v551 = vpop.permute.xlu0 %550
  %s553 = sor.u32 256, 8
  %554 = vbcast.lane.b32.xlu0 %v548, %s553
  %v555 = vpop.permute.xlu0 %554
  %v556 = vlaneseq
  %v557 = vshrl.u32 %v556, 7
  %v558 = vsub.s32 7, %v557
  %v559 = vrot.slane %v390, %v558
  %561 = vbcast.lane.b32.xlu0 %v559, 256
  %v562 = vpop.permute.xlu0 %561
  %s564 = sor.u32 256, 8
  %565 = vbcast.lane.b32.xlu0 %v559, %s564
  %v566 = vpop.permute.xlu0 %565
  %567 = vrot.lane.b32.xlu0 %v21, 125
  %v568 = vpop.permute.xlu0 %567
  %569 = vrot.lane.b32.xlu0 %v22, 125
  %v570 = vpop.permute.xlu0 %569
  %vm571 = vcmask 105472
  %v572 = vsel %vm571, %v568, 50
  %v573 = vsel %vm571, %v570, 50
  %v574 = vadd.s32 %v572, 64
  %v575 = vadd.s32 %v573, 64
  %v576 = vlaneseq
  %v577 = vshrl.u32 %v576, 7
  %v578 = vsub.s32 0, %v577
  %v579 = vrot.slane %v574, %v578
  %581 = vbcast.lane.b32.xlu0 %v579, 256
  %v582 = vpop.permute.xlu0 %581
  %s584 = sor.u32 256, 8
  %585 = vbcast.lane.b32.xlu0 %v579, %s584
  %v586 = vpop.permute.xlu0 %585
  %v587 = vlaneseq
  %v588 = vshrl.u32 %v587, 7
  %v589 = vsub.s32 1, %v588
  %v590 = vrot.slane %v574, %v589
  %592 = vbcast.lane.b32.xlu0 %v590, 256
  %v593 = vpop.permute.xlu0 %592
  %s595 = sor.u32 256, 8
  %596 = vbcast.lane.b32.xlu0 %v590, %s595
  %v597 = vpop.permute.xlu0 %596
  %v598 = vlaneseq
  %v599 = vshrl.u32 %v598, 7
  %v600 = vsub.s32 2, %v599
  %v601 = vrot.slane %v574, %v600
  %603 = vbcast.lane.b32.xlu0 %v601, 256
  %v604 = vpop.permute.xlu0 %603
  %s606 = sor.u32 256, 8
  %607 = vbcast.lane.b32.xlu0 %v601, %s606
  %v608 = vpop.permute.xlu0 %607
  %v609 = vlaneseq
  %v610 = vshrl.u32 %v609, 7
  %v611 = vsub.s32 3, %v610
  %v612 = vrot.slane %v574, %v611
  %614 = vbcast.lane.b32.xlu0 %v612, 256
  %v615 = vpop.permute.xlu0 %614
  %s617 = sor.u32 256, 8
  %618 = vbcast.lane.b32.xlu0 %v612, %s617
  %v619 = vpop.permute.xlu0 %618
  %v620 = vlaneseq
  %v621 = vshrl.u32 %v620, 7
  %v622 = vsub.s32 4, %v621
  %v623 = vrot.slane %v574, %v622
  %625 = vbcast.lane.b32.xlu0 %v623, 256
  %v626 = vpop.permute.xlu0 %625
  %s628 = sor.u32 256, 8
  %629 = vbcast.lane.b32.xlu0 %v623, %s628
  %v630 = vpop.permute.xlu0 %629
  %v631 = vlaneseq
  %v632 = vshrl.u32 %v631, 7
  %v633 = vsub.s32 5, %v632
  %v634 = vrot.slane %v574, %v633
  %636 = vbcast.lane.b32.xlu0 %v634, 256
  %v637 = vpop.permute.xlu0 %636
  %s639 = sor.u32 256, 8
  %640 = vbcast.lane.b32.xlu0 %v634, %s639
  %v641 = vpop.permute.xlu0 %640
  %v642 = vlaneseq
  %v643 = vshrl.u32 %v642, 7
  %v644 = vsub.s32 6, %v643
  %v645 = vrot.slane %v574, %v644
  %647 = vbcast.lane.b32.xlu0 %v645, 256
  %v648 = vpop.permute.xlu0 %647
  %s650 = sor.u32 256, 8
  %651 = vbcast.lane.b32.xlu0 %v645, %s650
  %v652 = vpop.permute.xlu0 %651
  %v653 = vlaneseq
  %v654 = vshrl.u32 %v653, 7
  %v655 = vsub.s32 7, %v654
  %v656 = vrot.slane %v574, %v655
  %658 = vbcast.lane.b32.xlu0 %v656, 256
  %v659 = vpop.permute.xlu0 %658
  %s661 = sor.u32 256, 8
  %662 = vbcast.lane.b32.xlu0 %v656, %s661
  %v663 = vpop.permute.xlu0 %662
  %v664 = vlaneseq
  %v665 = vshrl.u32 %v664, 7
  %v666 = vsub.s32 0, %v665
  %v667 = vrot.slane %v575, %v666
  %669 = vbcast.lane.b32.xlu0 %v667, 256
  %v670 = vpop.permute.xlu0 %669
  %s672 = sor.u32 256, 8
  %673 = vbcast.lane.b32.xlu0 %v667, %s672
  %v674 = vpop.permute.xlu0 %673
  %v675 = vlaneseq
  %v676 = vshrl.u32 %v675, 7
  %v677 = vsub.s32 1, %v676
  %v678 = vrot.slane %v575, %v677
  %680 = vbcast.lane.b32.xlu0 %v678, 256
  %v681 = vpop.permute.xlu0 %680
  %s683 = sor.u32 256, 8
  %684 = vbcast.lane.b32.xlu0 %v678, %s683
  %v685 = vpop.permute.xlu0 %684
  %v686 = vlaneseq
  %v687 = vshrl.u32 %v686, 7
  %v688 = vsub.s32 2, %v687
  %v689 = vrot.slane %v575, %v688
  %691 = vbcast.lane.b32.xlu0 %v689, 256
  %v692 = vpop.permute.xlu0 %691
  %s694 = sor.u32 256, 8
  %695 = vbcast.lane.b32.xlu0 %v689, %s694
  %v696 = vpop.permute.xlu0 %695
  %v697 = vlaneseq
  %v698 = vshrl.u32 %v697, 7
  %v699 = vsub.s32 3, %v698
  %v700 = vrot.slane %v575, %v699
  %702 = vbcast.lane.b32.xlu0 %v700, 256
  %v703 = vpop.permute.xlu0 %702
  %s705 = sor.u32 256, 8
  %706 = vbcast.lane.b32.xlu0 %v700, %s705
  %v707 = vpop.permute.xlu0 %706
  %v708 = vlaneseq
  %v709 = vshrl.u32 %v708, 7
  %v710 = vsub.s32 4, %v709
  %v711 = vrot.slane %v575, %v710
  %713 = vbcast.lane.b32.xlu0 %v711, 256
  %v714 = vpop.permute.xlu0 %713
  %s716 = sor.u32 256, 8
  %717 = vbcast.lane.b32.xlu0 %v711, %s716
  %v718 = vpop.permute.xlu0 %717
  %v719 = vlaneseq
  %v720 = vshrl.u32 %v719, 7
  %v721 = vsub.s32 5, %v720
  %v722 = vrot.slane %v575, %v721
  %724 = vbcast.lane.b32.xlu0 %v722, 256
  %v725 = vpop.permute.xlu0 %724
  %s727 = sor.u32 256, 8
  %728 = vbcast.lane.b32.xlu0 %v722, %s727
  %v729 = vpop.permute.xlu0 %728
  %v730 = vlaneseq
  %v731 = vshrl.u32 %v730, 7
  %v732 = vsub.s32 6, %v731
  %v733 = vrot.slane %v575, %v732
  %735 = vbcast.lane.b32.xlu0 %v733, 256
  %v736 = vpop.permute.xlu0 %735
  %s738 = sor.u32 256, 8
  %739 = vbcast.lane.b32.xlu0 %v733, %s738
  %v740 = vpop.permute.xlu0 %739
  %v741 = vlaneseq
  %v742 = vshrl.u32 %v741, 7
  %v743 = vsub.s32 7, %v742
  %v744 = vrot.slane %v575, %v743
  %746 = vbcast.lane.b32.xlu0 %v744, 256
  %v747 = vpop.permute.xlu0 %746
  %s749 = sor.u32 256, 8
  %750 = vbcast.lane.b32.xlu0 %v744, %s749
  %v751 = vpop.permute.xlu0 %750
  %v752 = vlaneseq
  %v753 = vand.u32 %v752, 127
  %vm754 = vcmp.eq.s32.totalorder %v753, %v29
  %vm755 = vcmp.eq.s32.totalorder %v753, %v33
  %vm756 = vcmp.eq.s32.totalorder %v753, %v40
  %vm757 = vcmp.eq.s32.totalorder %v753, %v44
  %vm758 = vcmp.eq.s32.totalorder %v753, %v51
  %vm759 = vcmp.eq.s32.totalorder %v753, %v55
  %vm760 = vcmp.eq.s32.totalorder %v753, %v62
  %vm761 = vcmp.eq.s32.totalorder %v753, %v66
  %vm762 = vcmp.eq.s32.totalorder %v753, %v73
  %vm763 = vcmp.eq.s32.totalorder %v753, %v77
  %vm764 = vcmp.eq.s32.totalorder %v753, %v84
  %vm765 = vcmp.eq.s32.totalorder %v753, %v88
  %vm766 = vcmp.eq.s32.totalorder %v753, %v95
  %vm767 = vcmp.eq.s32.totalorder %v753, %v99
  %vm768 = vcmp.eq.s32.totalorder %v753, %v106
  %vm769 = vcmp.eq.s32.totalorder %v753, %v110
  %vm770 = vcmp.eq.s32.totalorder %v753, %v117
  %vm771 = vcmp.eq.s32.totalorder %v753, %v121
  %vm772 = vcmp.eq.s32.totalorder %v753, %v128
  %vm773 = vcmp.eq.s32.totalorder %v753, %v132
  %vm774 = vcmp.eq.s32.totalorder %v753, %v139
  %vm775 = vcmp.eq.s32.totalorder %v753, %v143
  %vm776 = vcmp.eq.s32.totalorder %v753, %v150
  %vm777 = vcmp.eq.s32.totalorder %v753, %v154
  %vm778 = vcmp.eq.s32.totalorder %v753, %v161
  %vm779 = vcmp.eq.s32.totalorder %v753, %v165
  %vm780 = vcmp.eq.s32.totalorder %v753, %v172
  %vm781 = vcmp.eq.s32.totalorder %v753, %v176
  %vm782 = vcmp.eq.s32.totalorder %v753, %v183
  %vm783 = vcmp.eq.s32.totalorder %v753, %v187
  %vm784 = vcmp.eq.s32.totalorder %v753, %v194
  %vm785 = vcmp.eq.s32.totalorder %v753, %v198
  %vm786 = vcmp.eq.s32.totalorder %v753, %v214
  %vm787 = vcmp.eq.s32.totalorder %v753, %v218
  %vm788 = vcmp.eq.s32.totalorder %v753, %v225
  %vm789 = vcmp.eq.s32.totalorder %v753, %v229
  %vm790 = vcmp.eq.s32.totalorder %v753, %v236
  %vm791 = vcmp.eq.s32.totalorder %v753, %v240
  %vm792 = vcmp.eq.s32.totalorder %v753, %v247
  %vm793 = vcmp.eq.s32.totalorder %v753, %v251
  %vm794 = vcmp.eq.s32.totalorder %v753, %v258
  %vm795 = vcmp.eq.s32.totalorder %v753, %v262
  %vm796 = vcmp.eq.s32.totalorder %v753, %v269
  %vm797 = vcmp.eq.s32.totalorder %v753, %v273
  %vm798 = vcmp.eq.s32.totalorder %v753, %v280
  %vm799 = vcmp.eq.s32.totalorder %v753, %v284
  %vm800 = vcmp.eq.s32.totalorder %v753, %v291
  %vm801 = vcmp.eq.s32.totalorder %v753, %v295
  %vm802 = vcmp.eq.s32.totalorder %v753, %v302
  %vm803 = vcmp.eq.s32.totalorder %v753, %v306
  %vm804 = vcmp.eq.s32.totalorder %v753, %v313
  %vm805 = vcmp.eq.s32.totalorder %v753, %v317
  %vm806 = vcmp.eq.s32.totalorder %v753, %v324
  %vm807 = vcmp.eq.s32.totalorder %v753, %v328
  %vm808 = vcmp.eq.s32.totalorder %v753, %v335
  %vm809 = vcmp.eq.s32.totalorder %v753, %v339
  %vm810 = vcmp.eq.s32.totalorder %v753, %v346
  %vm811 = vcmp.eq.s32.totalorder %v753, %v350
  %vm812 = vcmp.eq.s32.totalorder %v753, %v357
  %vm813 = vcmp.eq.s32.totalorder %v753, %v361
  %vm814 = vcmp.eq.s32.totalorder %v753, %v368
  %vm815 = vcmp.eq.s32.totalorder %v753, %v372
  %vm816 = vcmp.eq.s32.totalorder %v753, %v379
  %vm817 = vcmp.eq.s32.totalorder %v753, %v383
  %vm818 = vmor %vm754, %vm786
  %vm819 = vmor %vm755, %vm787
  %vm820 = vmor %vm756, %vm788
  %vm821 = vmor %vm757, %vm789
  %vm822 = vmor %vm758, %vm790
  %vm823 = vmor %vm759, %vm791
  %vm824 = vmor %vm760, %vm792
  %vm825 = vmor %vm761, %vm793
  %vm826 = vmor %vm762, %vm794
  %vm827 = vmor %vm763, %vm795
  %vm828 = vmor %vm764, %vm796
  %vm829 = vmor %vm765, %vm797
  %vm830 = vmor %vm766, %vm798
  %vm831 = vmor %vm767, %vm799
  %vm832 = vmor %vm768, %vm800
  %vm833 = vmor %vm769, %vm801
  %vm834 = vmor %vm770, %vm802
  %vm835 = vmor %vm771, %vm803
  %vm836 = vmor %vm772, %vm804
  %vm837 = vmor %vm773, %vm805
  %vm838 = vmor %vm774, %vm806
  %vm839 = vmor %vm775, %vm807
  %vm840 = vmor %vm776, %vm808
  %vm841 = vmor %vm777, %vm809
  %vm842 = vmor %vm778, %vm810
  %vm843 = vmor %vm779, %vm811
  %vm844 = vmor %vm780, %vm812
  %vm845 = vmor %vm781, %vm813
  %vm846 = vmor %vm782, %vm814
  %vm847 = vmor %vm783, %vm815
  %vm848 = vmor %vm784, %vm816
  %vm849 = vmor %vm785, %vm817
  %v850 = vsel %vm818, 1, 0
  %v851 = vsel %vm819, 1, 0
  %v852 = vsel %vm820, 1, 0
  %v853 = vsel %vm821, 1, 0
  %v854 = vsel %vm822, 1, 0
  %v855 = vsel %vm823, 1, 0
  %v856 = vsel %vm824, 1, 0
  %v857 = vsel %vm825, 1, 0
  %v858 = vsel %vm826, 1, 0
  %v859 = vsel %vm827, 1, 0
  %v860 = vsel %vm828, 1, 0
  %v861 = vsel %vm829, 1, 0
  %v862 = vsel %vm830, 1, 0
  %v863 = vsel %vm831, 1, 0
  %v864 = vsel %vm832, 1, 0
  %v865 = vsel %vm833, 1, 0
  %v866 = vsel %vm834, 1, 0
  %v867 = vsel %vm835, 1, 0
  %v868 = vsel %vm836, 1, 0
  %v869 = vsel %vm837, 1, 0
  %v870 = vsel %vm838, 1, 0
  %v871 = vsel %vm839, 1, 0
  %v872 = vsel %vm840, 1, 0
  %v873 = vsel %vm841, 1, 0
  %v874 = vsel %vm842, 1, 0
  %v875 = vsel %vm843, 1, 0
  %v876 = vsel %vm844, 1, 0
  %v877 = vsel %vm845, 1, 0
  %v878 = vsel %vm846, 1, 0
  %v879 = vsel %vm847, 1, 0
  %v880 = vsel %vm848, 1, 0
  %v881 = vsel %vm849, 1, 0
  %v882 = vcvt.s32.f32 %v850
  %v883 = vcvt.s32.f32 %v851
  %v884 = vcvt.s32.f32 %v852
  %v885 = vcvt.s32.f32 %v853
  %v886 = vcvt.s32.f32 %v854
  %v887 = vcvt.s32.f32 %v855
  %v888 = vcvt.s32.f32 %v856
  %v889 = vcvt.s32.f32 %v857
  %v890 = vcvt.s32.f32 %v858
  %v891 = vcvt.s32.f32 %v859
  %v892 = vcvt.s32.f32 %v860
  %v893 = vcvt.s32.f32 %v861
  %v894 = vcvt.s32.f32 %v862
  %v895 = vcvt.s32.f32 %v863
  %v896 = vcvt.s32.f32 %v864
  %v897 = vcvt.s32.f32 %v865
  %v898 = vcvt.s32.f32 %v866
  %v899 = vcvt.s32.f32 %v867
  %v900 = vcvt.s32.f32 %v868
  %v901 = vcvt.s32.f32 %v869
  %v902 = vcvt.s32.f32 %v870
  %v903 = vcvt.s32.f32 %v871
  %v904 = vcvt.s32.f32 %v872
  %v905 = vcvt.s32.f32 %v873
  %v906 = vcvt.s32.f32 %v874
  %v907 = vcvt.s32.f32 %v875
  %v908 = vcvt.s32.f32 %v876
  %v909 = vcvt.s32.f32 %v877
  %v910 = vcvt.s32.f32 %v878
  %v911 = vcvt.s32.f32 %v879
  %v912 = vcvt.s32.f32 %v880
  %v913 = vcvt.s32.f32 %v881
  %v914 = vpack.c.bf16 %v883, %v882
  %v915 = vpack.c.bf16 %v885, %v884
  %v916 = vpack.c.bf16 %v887, %v886
  %v917 = vpack.c.bf16 %v889, %v888
  %v918 = vpack.c.bf16 %v891, %v890
  %v919 = vpack.c.bf16 %v893, %v892
  %v920 = vpack.c.bf16 %v895, %v894
  %v921 = vpack.c.bf16 %v897, %v896
  %v922 = vpack.c.bf16 %v899, %v898
  %v923 = vpack.c.bf16 %v901, %v900
  %v924 = vpack.c.bf16 %v903, %v902
  %v925 = vpack.c.bf16 %v905, %v904
  %v926 = vpack.c.bf16 %v907, %v906
  %v927 = vpack.c.bf16 %v909, %v908
  %v928 = vpack.c.bf16 %v911, %v910
  %v929 = vpack.c.bf16 %v913, %v912
  %vm930 = vcmp.eq.s32.totalorder %v753, %v397
  %vm931 = vcmp.eq.s32.totalorder %v753, %v401
  %vm932 = vcmp.eq.s32.totalorder %v753, %v408
  %vm933 = vcmp.eq.s32.totalorder %v753, %v412
  %vm934 = vcmp.eq.s32.totalorder %v753, %v419
  %vm935 = vcmp.eq.s32.totalorder %v753, %v423
  %vm936 = vcmp.eq.s32.totalorder %v753, %v430
  %vm937 = vcmp.eq.s32.totalorder %v753, %v434
  %vm938 = vcmp.eq.s32.totalorder %v753, %v441
  %vm939 = vcmp.eq.s32.totalorder %v753, %v445
  %vm940 = vcmp.eq.s32.totalorder %v753, %v452
  %vm941 = vcmp.eq.s32.totalorder %v753, %v456
  %vm942 = vcmp.eq.s32.totalorder %v753, %v463
  %vm943 = vcmp.eq.s32.totalorder %v753, %v467
  %vm944 = vcmp.eq.s32.totalorder %v753, %v474
  %vm945 = vcmp.eq.s32.totalorder %v753, %v478
  %vm946 = vcmp.eq.s32.totalorder %v753, %v485
  %vm947 = vcmp.eq.s32.totalorder %v753, %v489
  %vm948 = vcmp.eq.s32.totalorder %v753, %v496
  %vm949 = vcmp.eq.s32.totalorder %v753, %v500
  %vm950 = vcmp.eq.s32.totalorder %v753, %v507
  %vm951 = vcmp.eq.s32.totalorder %v753, %v511
  %vm952 = vcmp.eq.s32.totalorder %v753, %v518
  %vm953 = vcmp.eq.s32.totalorder %v753, %v522
  %vm954 = vcmp.eq.s32.totalorder %v753, %v529
  %vm955 = vcmp.eq.s32.totalorder %v753, %v533
  %vm956 = vcmp.eq.s32.totalorder %v753, %v540
  %vm957 = vcmp.eq.s32.totalorder %v753, %v544
  %vm958 = vcmp.eq.s32.totalorder %v753, %v551
  %vm959 = vcmp.eq.s32.totalorder %v753, %v555
  %vm960 = vcmp.eq.s32.totalorder %v753, %v562
  %vm961 = vcmp.eq.s32.totalorder %v753, %v566
  %vm962 = vcmp.eq.s32.totalorder %v753, %v582
  %vm963 = vcmp.eq.s32.totalorder %v753, %v586
  %vm964 = vcmp.eq.s32.totalorder %v753, %v593
  %vm965 = vcmp.eq.s32.totalorder %v753, %v597
  %vm966 = vcmp.eq.s32.totalorder %v753, %v604
  %vm967 = vcmp.eq.s32.totalorder %v753, %v608
  %vm968 = vcmp.eq.s32.totalorder %v753, %v615
  %vm969 = vcmp.eq.s32.totalorder %v753, %v619
  %vm970 = vcmp.eq.s32.totalorder %v753, %v626
  %vm971 = vcmp.eq.s32.totalorder %v753, %v630
  %vm972 = vcmp.eq.s32.totalorder %v753, %v637
  %vm973 = vcmp.eq.s32.totalorder %v753, %v641
  %vm974 = vcmp.eq.s32.totalorder %v753, %v648
  %vm975 = vcmp.eq.s32.totalorder %v753, %v652
  %vm976 = vcmp.eq.s32.totalorder %v753, %v659
  %vm977 = vcmp.eq.s32.totalorder %v753, %v663
  %vm978 = vcmp.eq.s32.totalorder %v753, %v670
  %vm979 = vcmp.eq.s32.totalorder %v753, %v674
  %vm980 = vcmp.eq.s32.totalorder %v753, %v681
  %vm981 = vcmp.eq.s32.totalorder %v753, %v685
  %vm982 = vcmp.eq.s32.totalorder %v753, %v692
  %vm983 = vcmp.eq.s32.totalorder %v753, %v696
  %vm984 = vcmp.eq.s32.totalorder %v753, %v703
  %vm985 = vcmp.eq.s32.totalorder %v753, %v707
  %vm986 = vcmp.eq.s32.totalorder %v753, %v714
  %vm987 = vcmp.eq.s32.totalorder %v753, %v718
  %vm988 = vcmp.eq.s32.totalorder %v753, %v725
  %vm989 = vcmp.eq.s32.totalorder %v753, %v729
  %vm990 = vcmp.eq.s32.totalorder %v753, %v736
  %vm991 = vcmp.eq.s32.totalorder %v753, %v740
  %vm992 = vcmp.eq.s32.totalorder %v753, %v747
  %vm993 = vcmp.eq.s32.totalorder %v753, %v751
  %vm994 = vmor %vm930, %vm962
  %vm995 = vmor %vm931, %vm963
  %vm996 = vmor %vm932, %vm964
  %vm997 = vmor %vm933, %vm965
  %vm998 = vmor %vm934, %vm966
  %vm999 = vmor %vm935, %vm967
  %vm1000 = vmor %vm936, %vm968
  %vm1001 = vmor %vm937, %vm969
  %vm1002 = vmor %vm938, %vm970
  %vm1003 = vmor %vm939, %vm971
  %vm1004 = vmor %vm940, %vm972
  %vm1005 = vmor %vm941, %vm973
  %vm1006 = vmor %vm942, %vm974
  %vm1007 = vmor %vm943, %vm975
  %vm1008 = vmor %vm944, %vm976
  %vm1009 = vmor %vm945, %vm977
  %vm1010 = vmor %vm946, %vm978
  %vm1011 = vmor %vm947, %vm979
  %vm1012 = vmor %vm948, %vm980
  %vm1013 = vmor %vm949, %vm981
  %vm1014 = vmor %vm950, %vm982
  %vm1015 = vmor %vm951, %vm983
  %vm1016 = vmor %vm952, %vm984
  %vm1017 = vmor %vm953, %vm985
  %vm1018 = vmor %vm954, %vm986
  %vm1019 = vmor %vm955, %vm987
  %vm1020 = vmor %vm956, %vm988
  %vm1021 = vmor %vm957, %vm989
  %vm1022 = vmor %vm958, %vm990
  %vm1023 = vmor %vm959, %vm991
  %vm1024 = vmor %vm960, %vm992
  %vm1025 = vmor %vm961, %vm993
  %v1026 = vsel %vm994, 1, 0
  %v1027 = vsel %vm995, 1, 0
  %v1028 = vsel %vm996, 1, 0
  %v1029 = vsel %vm997, 1, 0
  %v1030 = vsel %vm998, 1, 0
  %v1031 = vsel %vm999, 1, 0
  %v1032 = vsel %vm1000, 1, 0
  %v1033 = vsel %vm1001, 1, 0
  %v1034 = vsel %vm1002, 1, 0
  %v1035 = vsel %vm1003, 1, 0
  %v1036 = vsel %vm1004, 1, 0
  %v1037 = vsel %vm1005, 1, 0
  %v1038 = vsel %vm1006, 1, 0
  %v1039 = vsel %vm1007, 1, 0
  %v1040 = vsel %vm1008, 1, 0
  %v1041 = vsel %vm1009, 1, 0
  %v1042 = vsel %vm1010, 1, 0
  %v1043 = vsel %vm1011, 1, 0
  %v1044 = vsel %vm1012, 1, 0
  %v1045 = vsel %vm1013, 1, 0
  %v1046 = vsel %vm1014, 1, 0
  %v1047 = vsel %vm1015, 1, 0
  %v1048 = vsel %vm1016, 1, 0
  %v1049 = vsel %vm1017, 1, 0
  %v1050 = vsel %vm1018, 1, 0
  %v1051 = vsel %vm1019, 1, 0
  %v1052 = vsel %vm1020, 1, 0
  %v1053 = vsel %vm1021, 1, 0
  %v1054 = vsel %vm1022, 1, 0
  %v1055 = vsel %vm1023, 1, 0
  %v1056 = vsel %vm1024, 1, 0
  %v1057 = vsel %vm1025, 1, 0
  %v1058 = vcvt.s32.f32 %v1026
  %v1059 = vcvt.s32.f32 %v1027
  %v1060 = vcvt.s32.f32 %v1028
  %v1061 = vcvt.s32.f32 %v1029
  %v1062 = vcvt.s32.f32 %v1030
  %v1063 = vcvt.s32.f32 %v1031
  %v1064 = vcvt.s32.f32 %v1032
  %v1065 = vcvt.s32.f32 %v1033
  %v1066 = vcvt.s32.f32 %v1034
  %v1067 = vcvt.s32.f32 %v1035
  %v1068 = vcvt.s32.f32 %v1036
  %v1069 = vcvt.s32.f32 %v1037
  %v1070 = vcvt.s32.f32 %v1038
  %v1071 = vcvt.s32.f32 %v1039
  %v1072 = vcvt.s32.f32 %v1040
  %v1073 = vcvt.s32.f32 %v1041
  %v1074 = vcvt.s32.f32 %v1042
  %v1075 = vcvt.s32.f32 %v1043
  %v1076 = vcvt.s32.f32 %v1044
  %v1077 = vcvt.s32.f32 %v1045
  %v1078 = vcvt.s32.f32 %v1046
  %v1079 = vcvt.s32.f32 %v1047
  %v1080 = vcvt.s32.f32 %v1048
  %v1081 = vcvt.s32.f32 %v1049
  %v1082 = vcvt.s32.f32 %v1050
  %v1083 = vcvt.s32.f32 %v1051
  %v1084 = vcvt.s32.f32 %v1052
  %v1085 = vcvt.s32.f32 %v1053
  %v1086 = vcvt.s32.f32 %v1054
  %v1087 = vcvt.s32.f32 %v1055
  %v1088 = vcvt.s32.f32 %v1056
  %v1089 = vcvt.s32.f32 %v1057
  %v1090 = vpack.c.bf16 %v1059, %v1058
  %v1091 = vpack.c.bf16 %v1061, %v1060
  %v1092 = vpack.c.bf16 %v1063, %v1062
  %v1093 = vpack.c.bf16 %v1065, %v1064
  %v1094 = vpack.c.bf16 %v1067, %v1066
  %v1095 = vpack.c.bf16 %v1069, %v1068
  %v1096 = vpack.c.bf16 %v1071, %v1070
  %v1097 = vpack.c.bf16 %v1073, %v1072
  %v1098 = vpack.c.bf16 %v1075, %v1074
  %v1099 = vpack.c.bf16 %v1077, %v1076
  %v1100 = vpack.c.bf16 %v1079, %v1078
  %v1101 = vpack.c.bf16 %v1081, %v1080
  %v1102 = vpack.c.bf16 %v1083, %v1082
  %v1103 = vpack.c.bf16 %v1085, %v1084
  %v1104 = vpack.c.bf16 %v1087, %v1086
  %v1105 = vpack.c.bf16 %v1089, %v1088
  %v1106 = vld [vmem:[%s1] sm:$0xf]
  %v1107 = vld [vmem:[%s1 + $0x4] sm:$0xf]
  %v1108 = vld [vmem:[%s1 + $0x8] sm:$0xf]
  %v1109 = vld [vmem:[%s1 + $0xc] sm:$0xf]
  %v1110 = vld [vmem:[%s1 + $0x10] sm:$0xf]
  %v1111 = vld [vmem:[%s1 + $0x14] sm:$0xf]
  %v1112 = vld [vmem:[%s1 + $0x18] sm:$0xf]
  %v1113 = vld [vmem:[%s1 + $0x1c] sm:$0xf]
  %v1114 = vld [vmem:[%s1 + $0x20] sm:$0xf]
  %v1115 = vld [vmem:[%s1 + $0x24] sm:$0xf]
  %v1116 = vld [vmem:[%s1 + $0x28] sm:$0xf]
  %v1117 = vld [vmem:[%s1 + $0x2c] sm:$0xf]
  %v1118 = vld [vmem:[%s1 + $0x30] sm:$0xf]
  %v1119 = vld [vmem:[%s1 + $0x34] sm:$0xf]
  %v1120 = vld [vmem:[%s1 + $0x38] sm:$0xf]
  %v1121 = vld [vmem:[%s1 + $0x3c] sm:$0xf]
  %v1122 = vld [vmem:[%s1 + $0x40] sm:$0xf]
  %v1123 = vld [vmem:[%s1 + $0x44] sm:$0xf]
  %v1124 = vld [vmem:[%s1 + $0x48] sm:$0xf]
  %v1125 = vld [vmem:[%s1 + $0x4c] sm:$0xf]
  %v1126 = vld [vmem:[%s1 + $0x50] sm:$0xf]
  %v1127 = vld [vmem:[%s1 + $0x54] sm:$0xf]
  %v1128 = vld [vmem:[%s1 + $0x58] sm:$0xf]
  %v1129 = vld [vmem:[%s1 + $0x5c] sm:$0xf]
  %v1130 = vld [vmem:[%s1 + $0x60] sm:$0xf]
  %v1131 = vld [vmem:[%s1 + $0x64] sm:$0xf]
  %v1132 = vld [vmem:[%s1 + $0x68] sm:$0xf]
  %v1133 = vld [vmem:[%s1 + $0x6c] sm:$0xf]
  %v1134 = vld [vmem:[%s1 + $0x70] sm:$0xf]
  %v1135 = vld [vmem:[%s1 + $0x74] sm:$0xf]
  %v1136 = vld [vmem:[%s1 + $0x78] sm:$0xf]
  %v1137 = vld [vmem:[%s1 + $0x7c] sm:$0xf]
  %v1170 = vunpack.c.l.b16 %v1106
  %v1171 = vunpack.c.l.b16 %v1107
  %v1172 = vunpack.c.l.b16 %v1108
  %v1173 = vunpack.c.l.b16 %v1109
  %v1174 = vunpack.c.l.b16 %v1110
  %v1175 = vunpack.c.l.b16 %v1111
  %v1176 = vunpack.c.l.b16 %v1112
  %v1177 = vunpack.c.l.b16 %v1113
  %v1178 = vunpack.c.l.b16 %v1114
  %v1179 = vunpack.c.l.b16 %v1115
  %v1180 = vunpack.c.l.b16 %v1116
  %v1181 = vunpack.c.l.b16 %v1117
  %v1182 = vunpack.c.l.b16 %v1118
  %v1183 = vunpack.c.l.b16 %v1119
  %v1184 = vunpack.c.l.b16 %v1120
  %v1185 = vunpack.c.l.b16 %v1121
  %v1186 = vunpack.c.l.b16 %v1122
  %v1187 = vunpack.c.l.b16 %v1123
  %v1188 = vunpack.c.l.b16 %v1124
  %v1189 = vunpack.c.l.b16 %v1125
  %v1190 = vunpack.c.l.b16 %v1126
  %v1191 = vunpack.c.l.b16 %v1127
  %v1192 = vunpack.c.l.b16 %v1128
  %v1193 = vunpack.c.l.b16 %v1129
  %v1194 = vunpack.c.l.b16 %v1130
  %v1195 = vunpack.c.l.b16 %v1131
  %v1196 = vunpack.c.l.b16 %v1132
  %v1197 = vunpack.c.l.b16 %v1133
  %v1198 = vunpack.c.l.b16 %v1134
  %v1199 = vunpack.c.l.b16 %v1135
  %v1200 = vunpack.c.l.b16 %v1136
  %v1201 = vunpack.c.l.b16 %v1137
  %v1202 = vpack.c.b16 %v1171, %v1170
  %v1203 = vpack.c.b16 %v1173, %v1172
  %v1204 = vpack.c.b16 %v1175, %v1174
  %v1205 = vpack.c.b16 %v1177, %v1176
  %v1206 = vpack.c.b16 %v1179, %v1178
  %v1207 = vpack.c.b16 %v1181, %v1180
  %v1208 = vpack.c.b16 %v1183, %v1182
  %v1209 = vpack.c.b16 %v1185, %v1184
  %v1210 = vpack.c.b16 %v1187, %v1186
  %v1211 = vpack.c.b16 %v1189, %v1188
  %v1212 = vpack.c.b16 %v1191, %v1190
  %v1213 = vpack.c.b16 %v1193, %v1192
  %v1214 = vpack.c.b16 %v1195, %v1194
  %v1215 = vpack.c.b16 %v1197, %v1196
  %v1216 = vpack.c.b16 %v1199, %v1198
  %v1217 = vpack.c.b16 %v1201, %v1200
  %1234 = vmatprep.subr.bf16.mxu0 0
  %1235 = vmatpush1.bf16.msra.mxu0 %v1209
  %1236 = vmatprep.subr.bf16.mxu0 0
  %1237 = vmatpush1.bf16.msra.mxu0 %v1208
  %1238 = vmatprep.subr.bf16.mxu0 0
  %1239 = vmatpush1.bf16.msra.mxu0 %v1207
  %1240 = vmatprep.subr.bf16.mxu0 0
  %1241 = vmatpush1.bf16.msra.mxu0 %v1206
  %1242 = vmatprep.subr.bf16.mxu0 0
  %1243 = vmatpush1.bf16.msra.mxu0 %v1205
  %1244 = vmatprep.subr.bf16.mxu0 0
  %1245 = vmatpush1.bf16.msra.mxu0 %v1204
  %1246 = vmatprep.subr.bf16.mxu0 0
  %1247 = vmatpush1.bf16.msra.mxu0 %v1203
  %1248 = vmatprep.subr.bf16.mxu0 0
  %1249 = vmatpush1.bf16.msra.mxu0 %v1202
  %1250 = vmatprep.subr.bf16.mxu0 0
  %1251 = vmatpush2.bf16.msra.mxu0 %v1217
  %1252 = vmatprep.subr.bf16.mxu0 0
  %1253 = vmatpush2.bf16.msra.mxu0 %v1216
  %1254 = vmatprep.subr.bf16.mxu0 0
  %1255 = vmatpush2.bf16.msra.mxu0 %v1215
  %1256 = vmatprep.subr.bf16.mxu0 0
  %1257 = vmatpush2.bf16.msra.mxu0 %v1214
  %1258 = vmatprep.subr.bf16.mxu0 0
  %1259 = vmatpush2.bf16.msra.mxu0 %v1213
  %1260 = vmatprep.subr.bf16.mxu0 0
  %1261 = vmatpush2.bf16.msra.mxu0 %v1212
  %1262 = vmatprep.subr.bf16.mxu0 0
  %1263 = vmatpush2.bf16.msra.mxu0 %v1211
  %1264 = vmatprep.subr.bf16.mxu0 0
  %1265 = vmatpush2.bf16.msra.mxu0 %v1210
  %1266 = vmatprep.mubr.bf16.mxu0 %v1090
  %1267 = vmatmul.mubr.bf16.gmra.mxu0 %v914
  %v1268 = vpop.f32.mrf.mxu0
  %v1269 = vadd.f32 0.0, %v1268
  %v1270 = vpop.f32.mrf.mxu0
  %v1271 = vpop.f32.mrf.mxu0
  %v1272 = vadd.f32 0.0, %v1271
  %v1273 = vpop.f32.mrf.mxu0
  %1274 = vmatprep.mubr.bf16.mxu0 %v1091
  %1275 = vmatmul.mubr.bf16.gmra.mxu0 %v915
  %v1276 = vpop.f32.mrf.mxu0
  %v1277 = vadd.f32 0.0, %v1276
  %v1278 = vpop.f32.mrf.mxu0
  %v1279 = vpop.f32.mrf.mxu0
  %v1280 = vadd.f32 0.0, %v1279
  %v1281 = vpop.f32.mrf.mxu0
  %1282 = vmatprep.mubr.bf16.mxu0 %v1092
  %1283 = vmatmul.mubr.bf16.gmra.mxu0 %v916
  %v1284 = vpop.f32.mrf.mxu0
  %v1285 = vadd.f32 0.0, %v1284
  %v1286 = vpop.f32.mrf.mxu0
  %v1287 = vpop.f32.mrf.mxu0
  %v1288 = vadd.f32 0.0, %v1287
  %v1289 = vpop.f32.mrf.mxu0
  %1290 = vmatprep.mubr.bf16.mxu0 %v1093
  %1291 = vmatmul.mubr.bf16.gmra.mxu0 %v917
  %v1292 = vpop.f32.mrf.mxu0
  %v1293 = vadd.f32 0.0, %v1292
  %v1294 = vpop.f32.mrf.mxu0
  %v1295 = vpop.f32.mrf.mxu0
  %v1296 = vadd.f32 0.0, %v1295
  %v1297 = vpop.f32.mrf.mxu0
  %1298 = vmatprep.mubr.bf16.mxu0 %v1094
  %1299 = vmatmul.mubr.bf16.gmra.mxu0 %v918
  %v1300 = vpop.f32.mrf.mxu0
  %v1301 = vadd.f32 0.0, %v1300
  %v1302 = vpop.f32.mrf.mxu0
  %v1303 = vpop.f32.mrf.mxu0
  %v1304 = vadd.f32 0.0, %v1303
  %v1305 = vpop.f32.mrf.mxu0
  %1306 = vmatprep.mubr.bf16.mxu0 %v1095
  %1307 = vmatmul.mubr.bf16.gmra.mxu0 %v919
  %v1308 = vpop.f32.mrf.mxu0
  %v1309 = vadd.f32 0.0, %v1308
  %v1310 = vpop.f32.mrf.mxu0
  %v1311 = vpop.f32.mrf.mxu0
  %v1312 = vadd.f32 0.0, %v1311
  %v1313 = vpop.f32.mrf.mxu0
  %1314 = vmatprep.mubr.bf16.mxu0 %v1096
  %1315 = vmatmul.mubr.bf16.gmra.mxu0 %v920
  %v1316 = vpop.f32.mrf.mxu0
  %v1317 = vadd.f32 0.0, %v1316
  %v1318 = vpop.f32.mrf.mxu0
  %v1319 = vpop.f32.mrf.mxu0
  %v1320 = vadd.f32 0.0, %v1319
  %v1321 = vpop.f32.mrf.mxu0
  %1322 = vmatprep.mubr.bf16.mxu0 %v1097
  %1323 = vmatmul.mubr.bf16.gmra.mxu0 %v921
  %v1324 = vpop.f32.mrf.mxu0
  %v1325 = vadd.f32 0.0, %v1324
  %v1326 = vpop.f32.mrf.mxu0
  %v1327 = vpop.f32.mrf.mxu0
  %v1328 = vadd.f32 0.0, %v1327
  %v1329 = vpop.f32.mrf.mxu0
  %1330 = vmatprep.mubr.bf16.mxu0 %v1098
  %1331 = vmatmul.mubr.bf16.gmra.mxu0 %v922
  %v1332 = vpop.f32.mrf.mxu0
  %v1333 = vadd.f32 0.0, %v1332
  %v1334 = vpop.f32.mrf.mxu0
  %v1335 = vpop.f32.mrf.mxu0
  %v1336 = vadd.f32 0.0, %v1335
  %v1337 = vpop.f32.mrf.mxu0
  %1338 = vmatprep.mubr.bf16.mxu0 %v1099
  %1339 = vmatmul.mubr.bf16.gmra.mxu0 %v923
  %v1340 = vpop.f32.mrf.mxu0
  %v1341 = vadd.f32 0.0, %v1340
  %v1342 = vpop.f32.mrf.mxu0
  %v1343 = vpop.f32.mrf.mxu0
  %v1344 = vadd.f32 0.0, %v1343
  %v1345 = vpop.f32.mrf.mxu0
  %1346 = vmatprep.mubr.bf16.mxu0 %v1100
  %1347 = vmatmul.mubr.bf16.gmra.mxu0 %v924
  %v1348 = vpop.f32.mrf.mxu0
  %v1349 = vadd.f32 0.0, %v1348
  %v1350 = vpop.f32.mrf.mxu0
  %v1351 = vpop.f32.mrf.mxu0
  %v1352 = vadd.f32 0.0, %v1351
  %v1353 = vpop.f32.mrf.mxu0
  %1354 = vmatprep.mubr.bf16.mxu0 %v1101
  %1355 = vmatmul.mubr.bf16.gmra.mxu0 %v925
  %v1356 = vpop.f32.mrf.mxu0
  %v1357 = vadd.f32 0.0, %v1356
  %v1358 = vpop.f32.mrf.mxu0
  %v1359 = vpop.f32.mrf.mxu0
  %v1360 = vadd.f32 0.0, %v1359
  %v1361 = vpop.f32.mrf.mxu0
  %1362 = vmatprep.mubr.bf16.mxu0 %v1102
  %1363 = vmatmul.mubr.bf16.gmra.mxu0 %v926
  %v1364 = vpop.f32.mrf.mxu0
  %v1365 = vadd.f32 0.0, %v1364
  %v1366 = vpop.f32.mrf.mxu0
  %v1367 = vpop.f32.mrf.mxu0
  %v1368 = vadd.f32 0.0, %v1367
  %v1369 = vpop.f32.mrf.mxu0
  %1370 = vmatprep.mubr.bf16.mxu0 %v1103
  %1371 = vmatmul.mubr.bf16.gmra.mxu0 %v927
  %v1372 = vpop.f32.mrf.mxu0
  %v1373 = vadd.f32 0.0, %v1372
  %v1374 = vpop.f32.mrf.mxu0
  %v1375 = vpop.f32.mrf.mxu0
  %v1376 = vadd.f32 0.0, %v1375
  %v1377 = vpop.f32.mrf.mxu0
  %1378 = vmatprep.mubr.bf16.mxu0 %v1104
  %1379 = vmatmul.mubr.bf16.gmra.mxu0 %v928
  %v1380 = vpop.f32.mrf.mxu0
  %v1381 = vadd.f32 0.0, %v1380
  %v1382 = vpop.f32.mrf.mxu0
  %v1383 = vpop.f32.mrf.mxu0
  %v1384 = vadd.f32 0.0, %v1383
  %v1385 = vpop.f32.mrf.mxu0
  %1386 = vmatprep.mubr.bf16.mxu0 %v1105
  %1387 = vmatmul.mubr.bf16.gmra.mxu0 %v929
  %v1388 = vpop.f32.mrf.mxu0
  %v1389 = vadd.f32 0.0, %v1388
  %v1390 = vpop.f32.mrf.mxu0
  %v1391 = vpop.f32.mrf.mxu0
  %v1392 = vadd.f32 0.0, %v1391
  %v1393 = vpop.f32.mrf.mxu0
  %1394 = vdwg.mxu0
  %vm1395 = vcmask 392192
  %v1396 = vsel %vm1395, %v1269, -inf
  %v1397 = vsel %vm1395, %v1272, -inf
  %v1398 = vmax.f32 %v1396, %v1397
  %v1399 = vrot.slane %v1398, 4
  %v1400 = vmax.f32 %v1398, %v1399
  %v1401 = vrot.slane %v1400, 2
  %v1402 = vmax.f32 %v1400, %v1401
  %v1403 = vrot.slane %v1402, 1
  %v1404 = vmax.f32 %v1402, %v1403
  %v1405 = vsel %vm1395, %v1277, -inf
  %v1406 = vsel %vm1395, %v1280, -inf
  %v1407 = vmax.f32 %v1405, %v1406
  %v1408 = vrot.slane %v1407, 4
  %v1409 = vmax.f32 %v1407, %v1408
  %v1410 = vrot.slane %v1409, 2
  %v1411 = vmax.f32 %v1409, %v1410
  %v1412 = vrot.slane %v1411, 1
  %v1413 = vmax.f32 %v1411, %v1412
  %v1414 = vsel %vm1395, %v1285, -inf
  %v1415 = vsel %vm1395, %v1288, -inf
  %v1416 = vmax.f32 %v1414, %v1415
  %v1417 = vrot.slane %v1416, 4
  %v1418 = vmax.f32 %v1416, %v1417
  %v1419 = vrot.slane %v1418, 2
  %v1420 = vmax.f32 %v1418, %v1419
  %v1421 = vrot.slane %v1420, 1
  %v1422 = vmax.f32 %v1420, %v1421
  %v1423 = vsel %vm1395, %v1293, -inf
  %v1424 = vsel %vm1395, %v1296, -inf
  %v1425 = vmax.f32 %v1423, %v1424
  %v1426 = vrot.slane %v1425, 4
  %v1427 = vmax.f32 %v1425, %v1426
  %v1428 = vrot.slane %v1427, 2
  %v1429 = vmax.f32 %v1427, %v1428
  %v1430 = vrot.slane %v1429, 1
  %v1431 = vmax.f32 %v1429, %v1430
  %v1432 = vsel %vm1395, %v1301, -inf
  %v1433 = vsel %vm1395, %v1304, -inf
  %v1434 = vmax.f32 %v1432, %v1433
  %v1435 = vrot.slane %v1434, 4
  %v1436 = vmax.f32 %v1434, %v1435
  %v1437 = vrot.slane %v1436, 2
  %v1438 = vmax.f32 %v1436, %v1437
  %v1439 = vrot.slane %v1438, 1
  %v1440 = vmax.f32 %v1438, %v1439
  %v1441 = vsel %vm1395, %v1309, -inf
  %v1442 = vsel %vm1395, %v1312, -inf
  %v1443 = vmax.f32 %v1441, %v1442
  %v1444 = vrot.slane %v1443, 4
  %v1445 = vmax.f32 %v1443, %v1444
  %v1446 = vrot.slane %v1445, 2
  %v1447 = vmax.f32 %v1445, %v1446
  %v1448 = vrot.slane %v1447, 1
  %v1449 = vmax.f32 %v1447, %v1448
  %v1450 = vsel %vm1395, %v1317, -inf
  %v1451 = vsel %vm1395, %v1320, -inf
  %v1452 = vmax.f32 %v1450, %v1451
  %v1453 = vrot.slane %v1452, 4
  %v1454 = vmax.f32 %v1452, %v1453
  %v1455 = vrot.slane %v1454, 2
  %v1456 = vmax.f32 %v1454, %v1455
  %v1457 = vrot.slane %v1456, 1
  %v1458 = vmax.f32 %v1456, %v1457
  %v1459 = vsel %vm1395, %v1325, -inf
  %v1460 = vsel %vm1395, %v1328, -inf
  %v1461 = vmax.f32 %v1459, %v1460
  %v1462 = vrot.slane %v1461, 4
  %v1463 = vmax.f32 %v1461, %v1462
  %v1464 = vrot.slane %v1463, 2
  %v1465 = vmax.f32 %v1463, %v1464
  %v1466 = vrot.slane %v1465, 1
  %v1467 = vmax.f32 %v1465, %v1466
  %v1468 = vsel %vm1395, %v1333, -inf
  %v1469 = vsel %vm1395, %v1336, -inf
  %v1470 = vmax.f32 %v1468, %v1469
  %v1471 = vrot.slane %v1470, 4
  %v1472 = vmax.f32 %v1470, %v1471
  %v1473 = vrot.slane %v1472, 2
  %v1474 = vmax.f32 %v1472, %v1473
  %v1475 = vrot.slane %v1474, 1
  %v1476 = vmax.f32 %v1474, %v1475
  %v1477 = vsel %vm1395, %v1341, -inf
  %v1478 = vsel %vm1395, %v1344, -inf
  %v1479 = vmax.f32 %v1477, %v1478
  %v1480 = vrot.slane %v1479, 4
  %v1481 = vmax.f32 %v1479, %v1480
  %v1482 = vrot.slane %v1481, 2
  %v1483 = vmax.f32 %v1481, %v1482
  %v1484 = vrot.slane %v1483, 1
  %v1485 = vmax.f32 %v1483, %v1484
  %v1486 = vsel %vm1395, %v1349, -inf
  %v1487 = vsel %vm1395, %v1352, -inf
  %v1488 = vmax.f32 %v1486, %v1487
  %v1489 = vrot.slane %v1488, 4
  %v1490 = vmax.f32 %v1488, %v1489
  %v1491 = vrot.slane %v1490, 2
  %v1492 = vmax.f32 %v1490, %v1491
  %v1493 = vrot.slane %v1492, 1
  %v1494 = vmax.f32 %v1492, %v1493
  %v1495 = vsel %vm1395, %v1357, -inf
  %v1496 = vsel %vm1395, %v1360, -inf
  %v1497 = vmax.f32 %v1495, %v1496
  %v1498 = vrot.slane %v1497, 4
  %v1499 = vmax.f32 %v1497, %v1498
  %v1500 = vrot.slane %v1499, 2
  %v1501 = vmax.f32 %v1499, %v1500
  %v1502 = vrot.slane %v1501, 1
  %v1503 = vmax.f32 %v1501, %v1502
  %v1504 = vsel %vm1395, %v1365, -inf
  %v1505 = vsel %vm1395, %v1368, -inf
  %v1506 = vmax.f32 %v1504, %v1505
  %v1507 = vrot.slane %v1506, 4
  %v1508 = vmax.f32 %v1506, %v1507
  %v1509 = vrot.slane %v1508, 2
  %v1510 = vmax.f32 %v1508, %v1509
  %v1511 = vrot.slane %v1510, 1
  %v1512 = vmax.f32 %v1510, %v1511
  %v1513 = vsel %vm1395, %v1373, -inf
  %v1514 = vsel %vm1395, %v1376, -inf
  %v1515 = vmax.f32 %v1513, %v1514
  %v1516 = vrot.slane %v1515, 4
  %v1517 = vmax.f32 %v1515, %v1516
  %v1518 = vrot.slane %v1517, 2
  %v1519 = vmax.f32 %v1517, %v1518
  %v1520 = vrot.slane %v1519, 1
  %v1521 = vmax.f32 %v1519, %v1520
  %v1522 = vsel %vm1395, %v1381, -inf
  %v1523 = vsel %vm1395, %v1384, -inf
  %v1524 = vmax.f32 %v1522, %v1523
  %v1525 = vrot.slane %v1524, 4
  %v1526 = vmax.f32 %v1524, %v1525
  %v1527 = vrot.slane %v1526, 2
  %v1528 = vmax.f32 %v1526, %v1527
  %v1529 = vrot.slane %v1528, 1
  %v1530 = vmax.f32 %v1528, %v1529
  %v1531 = vsel %vm1395, %v1389, -inf
  %v1532 = vsel %vm1395, %v1392, -inf
  %v1533 = vmax.f32 %v1531, %v1532
  %v1534 = vrot.slane %v1533, 4
  %v1535 = vmax.f32 %v1533, %v1534
  %v1536 = vrot.slane %v1535, 2
  %v1537 = vmax.f32 %v1535, %v1536
  %v1538 = vrot.slane %v1537, 1
  %v1539 = vmax.f32 %v1537, %v1538
  %v1540 = vld [vmem:[%s2] sm:$0x1]
  %v1542 = vlaneseq
  %v1543 = vshrl.u32 %v1542, 7
  %v1544 = vsub.s32 0, %v1543
  %v1545 = vrot.slane %v1540, %v1544
  %v1547 = vadd.f32 %v1404, %v1545
  %v1548 = vadd.f32 %v1413, %v1545
  %v1549 = vadd.f32 %v1422, %v1545
  %v1550 = vadd.f32 %v1431, %v1545
  %v1551 = vadd.f32 %v1440, %v1545
  %v1552 = vadd.f32 %v1449, %v1545
  %v1553 = vadd.f32 %v1458, %v1545
  %v1554 = vadd.f32 %v1467, %v1545
  %v1555 = vadd.f32 %v1476, %v1545
  %v1556 = vadd.f32 %v1485, %v1545
  %v1557 = vadd.f32 %v1494, %v1545
  %v1558 = vadd.f32 %v1503, %v1545
  %v1559 = vadd.f32 %v1512, %v1545
  %v1560 = vadd.f32 %v1521, %v1545
  %v1561 = vadd.f32 %v1530, %v1545
  %v1562 = vadd.f32 %v1539, %v1545
  %v1563 = vmax.f32 %v1547, 0.0
  %v1564 = vmax.f32 %v1548, 0.0
  %v1565 = vmax.f32 %v1549, 0.0
  %v1566 = vmax.f32 %v1550, 0.0
  %v1567 = vmax.f32 %v1551, 0.0
  %v1568 = vmax.f32 %v1552, 0.0
  %v1569 = vmax.f32 %v1553, 0.0
  %v1570 = vmax.f32 %v1554, 0.0
  %v1571 = vmax.f32 %v1555, 0.0
  %v1572 = vmax.f32 %v1556, 0.0
  %v1573 = vmax.f32 %v1557, 0.0
  %v1574 = vmax.f32 %v1558, 0.0
  %v1575 = vmax.f32 %v1559, 0.0
  %v1576 = vmax.f32 %v1560, 0.0
  %v1577 = vmax.f32 %v1561, 0.0
  %v1578 = vmax.f32 %v1562, 0.0
  %v1579 = vpack.c.bf16 %v1563, %v1563
  %v1580 = vpack.c.bf16 %v1564, %v1564
  %v1581 = vpack.c.bf16 %v1565, %v1565
  %v1582 = vpack.c.bf16 %v1566, %v1566
  %v1583 = vpack.c.bf16 %v1567, %v1567
  %v1584 = vpack.c.bf16 %v1568, %v1568
  %v1585 = vpack.c.bf16 %v1569, %v1569
  %v1586 = vpack.c.bf16 %v1570, %v1570
  %v1587 = vpack.c.bf16 %v1571, %v1571
  %v1588 = vpack.c.bf16 %v1572, %v1572
  %v1589 = vpack.c.bf16 %v1573, %v1573
  %v1590 = vpack.c.bf16 %v1574, %v1574
  %v1591 = vpack.c.bf16 %v1575, %v1575
  %v1592 = vpack.c.bf16 %v1576, %v1576
  %v1593 = vpack.c.bf16 %v1577, %v1577
  %v1594 = vpack.c.bf16 %v1578, %v1578
  %v1595 = vld [vmem:[%s3] sm:$0xf]
  %v1596 = vld [vmem:[%s3 + $0x4] sm:$0xf]
  %v1597 = vld [vmem:[%s3 + $0x8] sm:$0xf]
  %v1598 = vld [vmem:[%s3 + $0xc] sm:$0xf]
  %v1599 = vld [vmem:[%s3 + $0x10] sm:$0xf]
  %v1600 = vld [vmem:[%s3 + $0x14] sm:$0xf]
  %v1601 = vld [vmem:[%s4] sm:$0x1]
  %v1603 = vlaneseq
  %v1604 = vshrl.u32 %v1603, 7
  %v1605 = vsub.s32 0, %v1604
  %v1606 = vrot.slane %v1601, %v1605
  %v1624 = vunpack.c.l.b16 %v1579
  %v1625 = vunpack.c.l.b16 %v1580
  %v1626 = vunpack.c.l.b16 %v1581
  %v1627 = vunpack.c.l.b16 %v1582
  %v1628 = vunpack.c.l.b16 %v1583
  %v1629 = vunpack.c.l.b16 %v1584
  %v1630 = vunpack.c.l.b16 %v1585
  %v1631 = vunpack.c.l.b16 %v1586
  %v1632 = vunpack.c.l.b16 %v1587
  %v1633 = vunpack.c.l.b16 %v1588
  %v1634 = vunpack.c.l.b16 %v1589
  %v1635 = vunpack.c.l.b16 %v1590
  %v1636 = vunpack.c.l.b16 %v1591
  %v1637 = vunpack.c.l.b16 %v1592
  %v1638 = vunpack.c.l.b16 %v1593
  %v1639 = vunpack.c.l.b16 %v1594
  %v1640 = vrot.slane %v1625, 7
  %vm1641 = vcmask 1041409
  %v1642 = vsel %vm1641, %v1640, %v1624
  %v1643 = vrot.slane %v1626, 6
  %vm1644 = vcmask 1042434
  %v1645 = vsel %vm1644, %v1643, %v1642
  %v1646 = vrot.slane %v1627, 5
  %vm1647 = vcmask 1043459
  %v1648 = vsel %vm1647, %v1646, %v1645
  %v1649 = vrot.slane %v1628, 4
  %vm1650 = vcmask 1044484
  %v1651 = vsel %vm1650, %v1649, %v1648
  %v1652 = vrot.slane %v1629, 3
  %vm1653 = vcmask 1045509
  %v1654 = vsel %vm1653, %v1652, %v1651
  %v1655 = vrot.slane %v1630, 2
  %vm1656 = vcmask 1046534
  %v1657 = vsel %vm1656, %v1655, %v1654
  %v1658 = vrot.slane %v1631, 1
  %vm1659 = vcmask 1047559
  %v1660 = vsel %vm1659, %v1658, %v1657
  %v1661 = vrot.slane %v1633, 7
  %v1662 = vsel %vm1641, %v1661, %v1632
  %v1663 = vrot.slane %v1634, 6
  %v1664 = vsel %vm1644, %v1663, %v1662
  %v1665 = vrot.slane %v1635, 5
  %v1666 = vsel %vm1647, %v1665, %v1664
  %v1667 = vrot.slane %v1636, 4
  %v1668 = vsel %vm1650, %v1667, %v1666
  %v1669 = vrot.slane %v1637, 3
  %v1670 = vsel %vm1653, %v1669, %v1668
  %v1671 = vrot.slane %v1638, 2
  %v1672 = vsel %vm1656, %v1671, %v1670
  %v1673 = vrot.slane %v1639, 1
  %v1674 = vsel %vm1659, %v1673, %v1672
  %v1675 = vpack.c.b16 %v1674, %v1660
  %v1682 = vunpack.c.l.b16 %v1595
  %v1683 = vunpack.c.l.b16 %v1596
  %v1684 = vunpack.c.l.b16 %v1597
  %v1685 = vunpack.c.l.b16 %v1598
  %v1686 = vunpack.c.l.b16 %v1599
  %v1687 = vunpack.c.l.b16 %v1600
  %v1688 = vpack.c.b16 %v1683, %v1682
  %v1689 = vpack.c.b16 %v1685, %v1684
  %v1690 = vpack.c.b16 %v1687, %v1686
  %v1695 = vsel %vm1395, %v1675, 0
  %1697 = vmatprep.subr.bf16.mxu0 0
  %1698 = vmatpush1.bf16.msra.mxu0 0
  %1699 = vmatprep.subr.bf16.mxu0 0
  %1700 = vmatpush1.bf16.msra.mxu0 0
  %1701 = vmatprep.subr.bf16.mxu0 0
  %1702 = vmatpush1.bf16.msra.mxu0 0
  %1703 = vmatprep.subr.bf16.mxu0 0
  %1704 = vmatpush1.bf16.msra.mxu0 0
  %1705 = vmatprep.subr.bf16.mxu0 0
  %1706 = vmatpush1.bf16.msra.mxu0 0
  %1707 = vmatprep.subr.bf16.mxu0 0
  %1708 = vmatpush1.bf16.msra.mxu0 %v1690
  %1709 = vmatprep.subr.bf16.mxu0 0
  %1710 = vmatpush1.bf16.msra.mxu0 %v1689
  %1711 = vmatprep.subr.bf16.mxu0 0
  %1712 = vmatpush1.bf16.msra.mxu0 %v1688
  %1713 = vmatprep.subr.bf16.mxu0 0
  %1714 = vmatpush2.bf16.msra.mxu0 0
  %1715 = vmatprep.subr.bf16.mxu0 0
  %1716 = vmatpush2.bf16.msra.mxu0 0
  %1717 = vmatprep.subr.bf16.mxu0 0
  %1718 = vmatpush2.bf16.msra.mxu0 0
  %1719 = vmatprep.subr.bf16.mxu0 0
  %1720 = vmatpush2.bf16.msra.mxu0 0
  %1721 = vmatprep.subr.bf16.mxu0 0
  %1722 = vmatpush2.bf16.msra.mxu0 0
  %1723 = vmatprep.subr.bf16.mxu0 0
  %1724 = vmatpush2.bf16.msra.mxu0 0
  %1725 = vmatprep.subr.bf16.mxu0 0
  %1726 = vmatpush2.bf16.msra.mxu0 0
  %1727 = vmatprep.subr.bf16.mxu0 0
  %1728 = vmatpush2.bf16.msra.mxu0 0
  %1729 = vmatprep.mubr.bf16.mxu0 0
  %1730 = vmatmul.mubr.bf16.gmra.mxu0 %v1695
  %v1731 = vpop.f32.mrf.mxu0
  %v1732 = vadd.f32 %v1606, %v1731
  %v1733 = vpop.f32.mrf.mxu0
  %v1734 = vpop.f32.mrf.mxu0
  %v1735 = vadd.f32 %v1606, %v1734
  %v1736 = vpop.f32.mrf.mxu0
  %1737 = vdwg.mxu0
  %1738 = vst [vmem:[%s5] sm:$0xff] %v1732
  %1739 = vst [vmem:[%s5 + $0x8] sm:$0xff] %v1735
  // Predicated region
  $region22: #{textcnn_forward.1} parent=0 // pred_check
    _
  $region23: #{textcnn_forward.1} parent=0 // pred_check_branch
    %1741 = sbr.rel (0) target = $region25
  $region24: #{textcnn_forward.1} parent=0 // pred_region
    _
  $region25: #{textcnn_forward.1} parent=0 // pred_fallthru
    _
  // Predicated region
  $region26: #{textcnn_forward.1} parent=0 // pred_check
    _
  $region27: #{textcnn_forward.1} parent=0 // pred_check_branch
    %1743 = sbr.rel (0) target = $region29
  $region28: #{textcnn_forward.1} parent=0 // pred_region
    _
  $region29: #{textcnn_forward.1} parent=0 // pred_fallthru
    _

</llo_original>
